<compile_context>
chip_gen: v7x
topology: tpu7x:2x2x1
jax: 0.10.0
libtpu: 0.0.40
codegen_flags: <defaults>
</compile_context>

<pallas_src>
import functools

import jax
import jax.numpy as jnp
from jax.experimental import pallas as pl
from jax.experimental.pallas import tpu as pltpu


def _round_up(x, m):
    return (x + m - 1) // m * m


# -----------------------------------------------------------------------------
# Pallas kernel
# -----------------------------------------------------------------------------
def make_qst_encoder_kernel(num_layers, seq_len, batch_pad, hidden, gate_width):
    """Kernel closed over static sizes (layers / timesteps statically unrolled).

    Inputs (all VMEM, laid out by the wrapper):
      q_tm      (S*BP, 1)      int32  time-major token ids (batch padded to BP)
      emb       (V, E)         bf16   embedding table
      per layer l:
        w_big   (D_l, GW)      bf16   input weights, gates packed [i|f|g|o]
        u_big   (H,   GW)      bf16   recurrent weights (true H rows, no pad)
        b_big   (1,   GW)      f32    b_ih + b_hh
      per layer l:
        fc_h    (H, embed)     bf16   fc rows for h_l
        fc_c    (H, embed)     bf16   fc rows for c_l
      fc_b      (1, embed)     f32
    Output: (BP, embed) f32
    Scratch: pre (S*BP, GW) f32, hseq (S*BP, H) f32
    """
    S, BP, H, GW = seq_len, batch_pad, hidden, gate_width

    def kernel(*refs):
        q_ref, emb_ref = refs[0], refs[1]
        idx = 2
        lstm_refs = []
        for _ in range(num_layers):
            lstm_refs.append(refs[idx:idx + 3])          # w_big, u_big, b_big
            idx += 3
        fc_refs = []
        for _ in range(num_layers):
            fc_refs.append(refs[idx:idx + 2])            # fc_h, fc_c
            idx += 2
        fc_b_ref = refs[idx]
        out_ref = refs[idx + 1]
        pre_ref = refs[idx + 2]                          # (S*BP, GW) f32 scratch
        hseq_ref = refs[idx + 3]                         # (S*BP, H)  f32 scratch

        vocab = emb_ref.shape[0]

        # --- fused embedding gather (one-hot on MXU) + tanh, time-major rows ---
        q = q_ref[...]                                           # (S*BP, 1) int32
        iota_v = jax.lax.broadcasted_iota(jnp.int32, (S * BP, vocab), 1)
        onehot = (q == iota_v).astype(jnp.bfloat16)              # (S*BP, V)
        x = jnp.tanh(jnp.dot(onehot, emb_ref[...],
                             preferred_element_type=jnp.float32))  # (S*BP, E) f32

        acc = jnp.zeros(out_ref.shape, jnp.float32)              # (BP, embed)
        inp = x
        for l in range(num_layers):
            w_ref, u_ref, b_ref = lstm_refs[l]

            # Hoisted input-path matmul + bias: one MXU pass for all S timesteps,
            # result parked in VMEM scratch (bounded vreg pressure).
            pre_ref[...] = (jnp.dot(inp.astype(jnp.bfloat16), w_ref[...],
                                    preferred_element_type=jnp.float32)
                            + b_ref[...])                        # (S*BP, GW)
            u = u_ref[...]                                       # (H, GW) bf16

            h = jnp.zeros((BP, H), jnp.float32)
            c = jnp.zeros((BP, H), jnp.float32)
            for t in range(S):                                   # static unroll
                # Tile-aligned row slice (BP == 8) + K=H recurrence matmul.
                gates = (pre_ref[pl.ds(t * BP, BP), :]
                         + jnp.dot(h.astype(jnp.bfloat16), u,
                                   preferred_element_type=jnp.float32))  # (BP, GW)
                # Two EUP passes over the single packed-gates vreg, then static
                # lane slices (gate order i|f|g|o, each H lanes).
                sg = jax.nn.sigmoid(gates)
                tg = jnp.tanh(gates)
                i_g = sg[:, 0 * H:1 * H]
                f_g = sg[:, 1 * H:2 * H]
                g_g = tg[:, 2 * H:3 * H]
                o_g = sg[:, 3 * H:4 * H]
                c = f_g * c + i_g * g_g
                h = o_g * jnp.tanh(c)
                if l + 1 < num_layers:
                    hseq_ref[pl.ds(t * BP, BP), :] = h           # next-layer input

            # Per-layer fc contribution: tanh(h_l) @ Wh_l + tanh(c_l) @ Wc_l
            # (replaces the cat(h, c) feature vector).
            fc_h_ref, fc_c_ref = fc_refs[l]
            acc = acc + jnp.dot(jnp.tanh(h).astype(jnp.bfloat16), fc_h_ref[...],
                                preferred_element_type=jnp.float32)
            acc = acc + jnp.dot(jnp.tanh(c).astype(jnp.bfloat16), fc_c_ref[...],
                                preferred_element_type=jnp.float32)

            if l + 1 < num_layers:
                inp = hseq_ref[...]                              # (S*BP, H)

        out_ref[...] = acc + fc_b_ref[...]

    return kernel


def _full_spec(shape):
    nd = len(shape)
    return pl.BlockSpec(shape, lambda i, nd=nd: (0,) * nd)


# -----------------------------------------------------------------------------
# Wrapper-side weight preparation (one-time layout plumbing)
# -----------------------------------------------------------------------------
def prepare_kernel_params(params, *, num_layers, hidden_size, embed_size):
    H = hidden_size
    GW = _round_up(4 * H, 128)       # packed gate width (== 4H when 4H % 128 == 0)

    def lane_pad(w):                 # pad trailing lanes (never read by the kernel)
        return jnp.pad(w, ((0, 0), (0, GW - w.shape[1])))

    prepped = {"embedding": params["embedding"].astype(jnp.bfloat16)}
    fc_w_t = params["fc_w"].astype(jnp.float32).T                # (2*L*H, embed)

    for l in range(num_layers):
        w_ih_t = params[f"w_ih_{l}"].astype(jnp.float32).T       # (D_l, 4H) [i|f|g|o]
        w_hh_t = params[f"w_hh_{l}"].astype(jnp.float32).T       # (H, 4H)
        bias = (params[f"b_ih_{l}"] + params[f"b_hh_{l}"]).astype(jnp.float32)
        bias = bias.reshape(1, 4 * H)

        prepped[f"w_big_{l}"] = lane_pad(w_ih_t).astype(jnp.bfloat16)
        prepped[f"u_big_{l}"] = lane_pad(w_hh_t).astype(jnp.bfloat16)
        prepped[f"b_big_{l}"] = lane_pad(bias)                   # f32; pad lanes == 0

        # fc rows, per PyTorch feature layout [h_0 | c_0 | h_1 | c_1 | ...]
        prepped[f"fc_h_{l}"] = fc_w_t[2 * l * H:2 * l * H + H].astype(jnp.bfloat16)
        prepped[f"fc_c_{l}"] = fc_w_t[2 * l * H + H:2 * (l + 1) * H].astype(jnp.bfloat16)

    prepped["fc_b"] = params["fc_b"].astype(jnp.float32).reshape(1, embed_size)
    return prepped


def qst_encoder_forward(question, prepped, *, num_layers, hidden_size):
    """question: (B, S) int32.  Returns (B, embed_size) float32."""
    B, S = question.shape
    H = hidden_size
    GW = prepped["u_big_0"].shape[1]                 # static
    embed_size = prepped["fc_b"].shape[1]            # static
    BP = _round_up(max(B, 8), 8)                     # sublane-pad batch to a tile

    # Pad batch rows (token id 0; padded rows never reach the real output) and
    # build time-major ids.  The (V,E) gather + tanh happen in-kernel.
    q = jnp.pad(question.astype(jnp.int32), ((0, BP - B), (0, 0)))
    q_tm = q.T.reshape(S * BP, 1)

    inputs = [q_tm, prepped["embedding"]]
    for l in range(num_layers):
        inputs += [prepped[f"w_big_{l}"], prepped[f"u_big_{l}"],
                   prepped[f"b_big_{l}"]]
    for l in range(num_layers):
        inputs += [prepped[f"fc_h_{l}"], prepped[f"fc_c_{l}"]]
    inputs.append(prepped["fc_b"])

    in_specs = [_full_spec(a.shape) for a in inputs]
    out_shape = jax.ShapeDtypeStruct((BP, embed_size), jnp.float32)

    kernel = make_qst_encoder_kernel(num_layers, S, BP, H, GW)
    out = pl.pallas_call(
        kernel,
        out_shape=out_shape,
        grid=(1,),
        in_specs=in_specs,
        out_specs=_full_spec((BP, embed_size)),
        scratch_shapes=[pltpu.VMEM((S * BP, GW), jnp.float32),
                        pltpu.VMEM((S * BP, H), jnp.float32)],
        compiler_params=pltpu.CompilerParams(dimension_semantics=("arbitrary",)),
    )(*inputs)
    return out[:B]


# -----------------------------------------------------------------------------
# Pure-JAX reference (same math, f32, no Pallas) for correctness check
# -----------------------------------------------------------------------------
def qst_encoder_reference(question, params, *, num_layers, hidden_size):
    H = hidden_size
    x = jnp.tanh(params["embedding"][question])                  # (B, S, E)
    x = jnp.transpose(x, (1, 0, 2)).astype(jnp.float32)          # (S, B, E)
    S, B, _ = x.shape
    inp = x
    feats = []
    for l in range(num_layers):
        w_ih, w_hh = params[f"w_ih_{l}"], params[f"w_hh_{l}"]
        bias = params[f"b_ih_{l}"] + params[f"b_hh_{l}"]
        h = jnp.zeros((B, H), jnp.float32)
        c = jnp.zeros((B, H), jnp.float32)
        outs = []
        for t in range(S):
            gates = inp[t] @ w_ih.T + h @ w_hh.T + bias
            i_g = jax.nn.sigmoid(gates[:, 0:H])
            f_g = jax.nn.sigmoid(gates[:, H:2 * H])
            g_g = jnp.tanh(gates[:, 2 * H:3 * H])
            o_g = jax.nn.sigmoid(gates[:, 3 * H:4 * H])
            c = f_g * c + i_g * g_g
            h = o_g * jnp.tanh(c)
            outs.append(h)
        inp = jnp.stack(outs, axis=0)
        feats += [h, c]
    feat = jnp.tanh(jnp.concatenate(feats, axis=1))
    return feat @ params["fc_w"].T + params["fc_b"]


# -----------------------------------------------------------------------------
# Deterministic parameter init (synthetic; PyTorch-style shapes, 1-D biases)
# -----------------------------------------------------------------------------
def init_params(key, *, vocab, word_embed, embed_size, num_layers, hidden_size):
    H = hidden_size
    params = {}
    keys = jax.random.split(key, 2 + 4 * num_layers + 2)
    k = iter(keys)
    params["embedding"] = 0.1 * jax.random.normal(next(k), (vocab, word_embed),
                                                  jnp.float32)
    for l in range(num_layers):
        in_dim = word_embed if l == 0 else H
        params[f"w_ih_{l}"] = 0.1 * jax.random.normal(next(k), (4 * H, in_dim),
                                                      jnp.float32)
        params[f"w_hh_{l}"] = 0.1 * jax.random.normal(next(k), (4 * H, H),
                                                      jnp.float32)
        params[f"b_ih_{l}"] = 0.1 * jax.random.normal(next(k), (4 * H,), jnp.float32)
        params[f"b_hh_{l}"] = 0.1 * jax.random.normal(next(k), (4 * H,), jnp.float32)
    params["fc_w"] = 0.1 * jax.random.normal(next(k),
                                             (embed_size, 2 * num_layers * H),
                                             jnp.float32)
    params["fc_b"] = 0.1 * jax.random.normal(next(k), (embed_size,), jnp.float32)
    return params


if __name__ == "__main__":
    # Small shapes consistent with the module.
    QST_VOCAB = 32
    WORD_EMBED = 16
    EMBED_SIZE = 32
    NUM_LAYERS = 2
    HIDDEN = 32
    BATCH = 2
    SEQ = 8

    root = jax.random.PRNGKey(0)
    k_params, k_q = jax.random.split(root)
    params = init_params(k_params, vocab=QST_VOCAB, word_embed=WORD_EMBED,
                         embed_size=EMBED_SIZE, num_layers=NUM_LAYERS,
                         hidden_size=HIDDEN)
    question = jax.random.randint(k_q, (BATCH, SEQ), 0, QST_VOCAB, dtype=jnp.int32)

    # One-time wrapper-side weight layout prep (transpose / bf16 cast / fc split).
    prepped = prepare_kernel_params(params, num_layers=NUM_LAYERS,
                                    hidden_size=HIDDEN, embed_size=EMBED_SIZE)

    fwd = jax.jit(functools.partial(qst_encoder_forward, num_layers=NUM_LAYERS,
                                    hidden_size=HIDDEN))
    out = fwd(question, prepped)
    out = jax.block_until_ready(out)

    ref = qst_encoder_reference(question, params, num_layers=NUM_LAYERS,
                                hidden_size=HIDDEN)
    ref = jax.block_until_ready(ref)

    assert out.shape == (BATCH, EMBED_SIZE), out.shape
    # Tolerance relaxed vs. the all-f32 version: MXU operands are bf16
    # (f32 accumulation), as recommended by the performance review.
    assert jnp.allclose(out, ref, rtol=2e-2, atol=2e-2), "mismatch vs reference"
    print("KERNEL_OK")
</pallas_src>

<mosaic_0001>
module attributes {stable_mosaic.version = 11 : i64} {
  func.func @kernel(%arg0: i32, %arg1: memref<64x1xi32, #tpu.memory_space<vmem>>, %arg2: memref<32x16xbf16, #tpu.memory_space<vmem>>, %arg3: memref<16x128xbf16, #tpu.memory_space<vmem>>, %arg4: memref<32x128xbf16, #tpu.memory_space<vmem>>, %arg5: memref<1x128xf32, #tpu.memory_space<vmem>>, %arg6: memref<32x128xbf16, #tpu.memory_space<vmem>>, %arg7: memref<32x128xbf16, #tpu.memory_space<vmem>>, %arg8: memref<1x128xf32, #tpu.memory_space<vmem>>, %arg9: memref<32x32xbf16, #tpu.memory_space<vmem>>, %arg10: memref<32x32xbf16, #tpu.memory_space<vmem>>, %arg11: memref<32x32xbf16, #tpu.memory_space<vmem>>, %arg12: memref<32x32xbf16, #tpu.memory_space<vmem>>, %arg13: memref<1x32xf32, #tpu.memory_space<vmem>>, %arg14: memref<8x32xf32, #tpu.memory_space<vmem>>, %arg15: memref<64x128xf32, #tpu.memory_space<vmem>>, %arg16: memref<64x32xf32, #tpu.memory_space<vmem>>) attributes {dimension_semantics = [#tpu.dimension_semantics<arbitrary>], iteration_bounds = array<i64: 1>, scalar_prefetch = 0 : i64, scratch_operands = 2 : i64, tpu.core_type = #tpu.core_type<tc>, window_params = [{pipeline_mode = #tpu.pipeline_mode<synchronous>, transform_indices = @transform_0, window_bounds = array<i64: 64, 1>}, {pipeline_mode = #tpu.pipeline_mode<synchronous>, transform_indices = @transform_1, window_bounds = array<i64: 32, 16>}, {pipeline_mode = #tpu.pipeline_mode<synchronous>, transform_indices = @transform_2, window_bounds = array<i64: 16, 128>}, {pipeline_mode = #tpu.pipeline_mode<synchronous>, transform_indices = @transform_3, window_bounds = array<i64: 32, 128>}, {pipeline_mode = #tpu.pipeline_mode<synchronous>, transform_indices = @transform_4, window_bounds = array<i64: 1, 128>}, {pipeline_mode = #tpu.pipeline_mode<synchronous>, transform_indices = @transform_5, window_bounds = array<i64: 32, 128>}, {pipeline_mode = #tpu.pipeline_mode<synchronous>, transform_indices = @transform_6, window_bounds = array<i64: 32, 128>}, {pipeline_mode = #tpu.pipeline_mode<synchronous>, transform_indices = @transform_7, window_bounds = array<i64: 1, 128>}, {pipeline_mode = #tpu.pipeline_mode<synchronous>, transform_indices = @transform_8, window_bounds = array<i64: 32, 32>}, {pipeline_mode = #tpu.pipeline_mode<synchronous>, transform_indices = @transform_9, window_bounds = array<i64: 32, 32>}, {pipeline_mode = #tpu.pipeline_mode<synchronous>, transform_indices = @transform_10, window_bounds = array<i64: 32, 32>}, {pipeline_mode = #tpu.pipeline_mode<synchronous>, transform_indices = @transform_11, window_bounds = array<i64: 32, 32>}, {pipeline_mode = #tpu.pipeline_mode<synchronous>, transform_indices = @transform_12, window_bounds = array<i64: 1, 32>}, {pipeline_mode = #tpu.pipeline_mode<synchronous>, transform_indices = @transform_13, window_bounds = array<i64: 8, 32>}]} {
    %c0 = arith.constant 0 : index
    %c0_0 = arith.constant 0 : index
    %0 = vector.load %arg1[%c0, %c0_0] : memref<64x1xi32, #tpu.memory_space<vmem>>, vector<64x1xi32>
    %1 = tpu.iota {dimensions = array<i32: 1>} : vector<64x32xi32>
    %2 = vector.broadcast %0 : vector<64x1xi32> to vector<64x32xi32>
    %3 = arith.cmpi eq, %2, %1 : vector<64x32xi32>
    %4 = arith.extui %3 : vector<64x32xi1> to vector<64x32xi32>
    %5 = arith.sitofp %4 : vector<64x32xi32> to vector<64x32xf32>
    %6 = arith.truncf %5 : vector<64x32xf32> to vector<64x32xbf16>
    %c0_1 = arith.constant 0 : index
    %c0_2 = arith.constant 0 : index
    %7 = vector.load %arg2[%c0_1, %c0_2] : memref<32x16xbf16, #tpu.memory_space<vmem>>, vector<32x16xbf16>
    %cst = arith.constant dense<0.000000e+00> : vector<64x16xf32>
    %8 = tpu.matmul %6, %7, %cst {dimension_numbers = #tpu.dot_dimension_numbers<[1], [0], [0], [1], [0, 0, 1, 1], [], []>} : vector<64x32xbf16>, vector<32x16xbf16>, vector<64x16xf32> -> vector<64x16xf32>
    %9 = math.tanh %8 : vector<64x16xf32>
    %cst_3 = arith.constant 0.000000e+00 : f32
    %10 = vector.broadcast %cst_3 : f32 to vector<8x32xf32>
    %11 = arith.truncf %9 : vector<64x16xf32> to vector<64x16xbf16>
    %c0_4 = arith.constant 0 : index
    %c0_5 = arith.constant 0 : index
    %12 = vector.load %arg3[%c0_4, %c0_5] : memref<16x128xbf16, #tpu.memory_space<vmem>>, vector<16x128xbf16>
    %cst_6 = arith.constant dense<0.000000e+00> : vector<64x128xf32>
    %13 = tpu.matmul %11, %12, %cst_6 {dimension_numbers = #tpu.dot_dimension_numbers<[1], [0], [0], [1], [0, 0, 1, 1], [], []>} : vector<64x16xbf16>, vector<16x128xbf16>, vector<64x128xf32> -> vector<64x128xf32>
    %c0_7 = arith.constant 0 : index
    %c0_8 = arith.constant 0 : index
    %14 = vector.load %arg5[%c0_7, %c0_8] : memref<1x128xf32, #tpu.memory_space<vmem>>, vector<1x128xf32>
    %15 = vector.broadcast %14 : vector<1x128xf32> to vector<64x128xf32>
    %16 = arith.addf %13, %15 : vector<64x128xf32>
    %c0_9 = arith.constant 0 : index
    %c0_10 = arith.constant 0 : index
    %17 = vector.load %arg15[%c0_9, %c0_10] : memref<64x128xf32, #tpu.memory_space<vmem>>, vector<64x128xf32>
    tpu.vector_store %arg15[%c0_9, %c0_10], %16 {strides = array<i32>} : memref<64x128xf32, #tpu.memory_space<vmem>>, vector<64x128xf32>,
    %c0_11 = arith.constant 0 : index
    %c0_12 = arith.constant 0 : index
    %18 = vector.load %arg4[%c0_11, %c0_12] : memref<32x128xbf16, #tpu.memory_space<vmem>>, vector<32x128xbf16>
    %cst_13 = arith.constant 0.000000e+00 : f32
    %19 = vector.broadcast %cst_13 : f32 to vector<8x32xf32>
    %cst_14 = arith.constant 0.000000e+00 : f32
    %20 = vector.broadcast %cst_14 : f32 to vector<8x32xf32>
    %c0_15 = arith.constant 0 : index
    %c0_16 = arith.constant 0 : index
    %21 = vector.load %arg15[%c0_15, %c0_16] : memref<64x128xf32, #tpu.memory_space<vmem>>, vector<8x128xf32>
    %22 = arith.truncf %19 : vector<8x32xf32> to vector<8x32xbf16>
    %cst_17 = arith.constant dense<0.000000e+00> : vector<8x128xf32>
    %23 = tpu.matmul %22, %18, %cst_17 {dimension_numbers = #tpu.dot_dimension_numbers<[1], [0], [0], [1], [0, 0, 1, 1], [], []>} : vector<8x32xbf16>, vector<32x128xbf16>, vector<8x128xf32> -> vector<8x128xf32>
    %24 = arith.addf %21, %23 : vector<8x128xf32>
    %25 = arith.negf %24 : vector<8x128xf32>
    %26 = math.exp %25 : vector<8x128xf32>
    %cst_18 = arith.constant 1.000000e+00 : f32
    %27 = vector.broadcast %cst_18 : f32 to vector<8x128xf32>
    %28 = arith.addf %27, %26 : vector<8x128xf32>
    %29 = arith.divf %27, %28 : vector<8x128xf32>
    %30 = math.tanh %24 : vector<8x128xf32>
    %31 = vector.extract_strided_slice %29 {offsets = [0, 0], sizes = [8, 32], strides = [1, 1]} : vector<8x128xf32> to vector<8x32xf32>
    %32 = vector.extract_strided_slice %29 {offsets = [0, 32], sizes = [8, 32], strides = [1, 1]} : vector<8x128xf32> to vector<8x32xf32>
    %33 = vector.extract_strided_slice %30 {offsets = [0, 64], sizes = [8, 32], strides = [1, 1]} : vector<8x128xf32> to vector<8x32xf32>
    %34 = vector.extract_strided_slice %29 {offsets = [0, 96], sizes = [8, 32], strides = [1, 1]} : vector<8x128xf32> to vector<8x32xf32>
    %35 = arith.mulf %32, %20 : vector<8x32xf32>
    %36 = arith.mulf %31, %33 : vector<8x32xf32>
    %37 = arith.addf %35, %36 : vector<8x32xf32>
    %38 = math.tanh %37 : vector<8x32xf32>
    %39 = arith.mulf %34, %38 : vector<8x32xf32>
    %c0_19 = arith.constant 0 : index
    %c0_20 = arith.constant 0 : index
    %40 = vector.load %arg16[%c0_19, %c0_20] : memref<64x32xf32, #tpu.memory_space<vmem>>, vector<8x32xf32>
    tpu.vector_store %arg16[%c0_19, %c0_20], %39 {strides = array<i32>} : memref<64x32xf32, #tpu.memory_space<vmem>>, vector<8x32xf32>,
    %c8 = arith.constant 8 : index
    %c0_21 = arith.constant 0 : index
    %41 = vector.load %arg15[%c8, %c0_21] : memref<64x128xf32, #tpu.memory_space<vmem>>, vector<8x128xf32>
    %42 = arith.truncf %39 : vector<8x32xf32> to vector<8x32xbf16>
    %cst_22 = arith.constant dense<0.000000e+00> : vector<8x128xf32>
    %43 = tpu.matmul %42, %18, %cst_22 {dimension_numbers = #tpu.dot_dimension_numbers<[1], [0], [0], [1], [0, 0, 1, 1], [], []>} : vector<8x32xbf16>, vector<32x128xbf16>, vector<8x128xf32> -> vector<8x128xf32>
    %44 = arith.addf %41, %43 : vector<8x128xf32>
    %45 = arith.negf %44 : vector<8x128xf32>
    %46 = math.exp %45 : vector<8x128xf32>
    %cst_23 = arith.constant 1.000000e+00 : f32
    %47 = vector.broadcast %cst_23 : f32 to vector<8x128xf32>
    %48 = arith.addf %47, %46 : vector<8x128xf32>
    %49 = arith.divf %47, %48 : vector<8x128xf32>
    %50 = math.tanh %44 : vector<8x128xf32>
    %51 = vector.extract_strided_slice %49 {offsets = [0, 0], sizes = [8, 32], strides = [1, 1]} : vector<8x128xf32> to vector<8x32xf32>
    %52 = vector.extract_strided_slice %49 {offsets = [0, 32], sizes = [8, 32], strides = [1, 1]} : vector<8x128xf32> to vector<8x32xf32>
    %53 = vector.extract_strided_slice %50 {offsets = [0, 64], sizes = [8, 32], strides = [1, 1]} : vector<8x128xf32> to vector<8x32xf32>
    %54 = vector.extract_strided_slice %49 {offsets = [0, 96], sizes = [8, 32], strides = [1, 1]} : vector<8x128xf32> to vector<8x32xf32>
    %55 = arith.mulf %52, %37 : vector<8x32xf32>
    %56 = arith.mulf %51, %53 : vector<8x32xf32>
    %57 = arith.addf %55, %56 : vector<8x32xf32>
    %58 = math.tanh %57 : vector<8x32xf32>
    %59 = arith.mulf %54, %58 : vector<8x32xf32>
    %c8_24 = arith.constant 8 : index
    %c0_25 = arith.constant 0 : index
    %60 = vector.load %arg16[%c8_24, %c0_25] : memref<64x32xf32, #tpu.memory_space<vmem>>, vector<8x32xf32>
    tpu.vector_store %arg16[%c8_24, %c0_25], %59 {strides = array<i32>} : memref<64x32xf32, #tpu.memory_space<vmem>>, vector<8x32xf32>,
    %c16 = arith.constant 16 : index
    %c0_26 = arith.constant 0 : index
    %61 = vector.load %arg15[%c16, %c0_26] : memref<64x128xf32, #tpu.memory_space<vmem>>, vector<8x128xf32>
    %62 = arith.truncf %59 : vector<8x32xf32> to vector<8x32xbf16>
    %cst_27 = arith.constant dense<0.000000e+00> : vector<8x128xf32>
    %63 = tpu.matmul %62, %18, %cst_27 {dimension_numbers = #tpu.dot_dimension_numbers<[1], [0], [0], [1], [0, 0, 1, 1], [], []>} : vector<8x32xbf16>, vector<32x128xbf16>, vector<8x128xf32> -> vector<8x128xf32>
    %64 = arith.addf %61, %63 : vector<8x128xf32>
    %65 = arith.negf %64 : vector<8x128xf32>
    %66 = math.exp %65 : vector<8x128xf32>
    %cst_28 = arith.constant 1.000000e+00 : f32
    %67 = vector.broadcast %cst_28 : f32 to vector<8x128xf32>
    %68 = arith.addf %67, %66 : vector<8x128xf32>
    %69 = arith.divf %67, %68 : vector<8x128xf32>
    %70 = math.tanh %64 : vector<8x128xf32>
    %71 = vector.extract_strided_slice %69 {offsets = [0, 0], sizes = [8, 32], strides = [1, 1]} : vector<8x128xf32> to vector<8x32xf32>
    %72 = vector.extract_strided_slice %69 {offsets = [0, 32], sizes = [8, 32], strides = [1, 1]} : vector<8x128xf32> to vector<8x32xf32>
    %73 = vector.extract_strided_slice %70 {offsets = [0, 64], sizes = [8, 32], strides = [1, 1]} : vector<8x128xf32> to vector<8x32xf32>
    %74 = vector.extract_strided_slice %69 {offsets = [0, 96], sizes = [8, 32], strides = [1, 1]} : vector<8x128xf32> to vector<8x32xf32>
    %75 = arith.mulf %72, %57 : vector<8x32xf32>
    %76 = arith.mulf %71, %73 : vector<8x32xf32>
    %77 = arith.addf %75, %76 : vector<8x32xf32>
    %78 = math.tanh %77 : vector<8x32xf32>
    %79 = arith.mulf %74, %78 : vector<8x32xf32>
    %c16_29 = arith.constant 16 : index
    %c0_30 = arith.constant 0 : index
    %80 = vector.load %arg16[%c16_29, %c0_30] : memref<64x32xf32, #tpu.memory_space<vmem>>, vector<8x32xf32>
    tpu.vector_store %arg16[%c16_29, %c0_30], %79 {strides = array<i32>} : memref<64x32xf32, #tpu.memory_space<vmem>>, vector<8x32xf32>,
    %c24 = arith.constant 24 : index
    %c0_31 = arith.constant 0 : index
    %81 = vector.load %arg15[%c24, %c0_31] : memref<64x128xf32, #tpu.memory_space<vmem>>, vector<8x128xf32>
    %82 = arith.truncf %79 : vector<8x32xf32> to vector<8x32xbf16>
    %cst_32 = arith.constant dense<0.000000e+00> : vector<8x128xf32>
    %83 = tpu.matmul %82, %18, %cst_32 {dimension_numbers = #tpu.dot_dimension_numbers<[1], [0], [0], [1], [0, 0, 1, 1], [], []>} : vector<8x32xbf16>, vector<32x128xbf16>, vector<8x128xf32> -> vector<8x128xf32>
    %84 = arith.addf %81, %83 : vector<8x128xf32>
    %85 = arith.negf %84 : vector<8x128xf32>
    %86 = math.exp %85 : vector<8x128xf32>
    %cst_33 = arith.constant 1.000000e+00 : f32
    %87 = vector.broadcast %cst_33 : f32 to vector<8x128xf32>
    %88 = arith.addf %87, %86 : vector<8x128xf32>
    %89 = arith.divf %87, %88 : vector<8x128xf32>
    %90 = math.tanh %84 : vector<8x128xf32>
    %91 = vector.extract_strided_slice %89 {offsets = [0, 0], sizes = [8, 32], strides = [1, 1]} : vector<8x128xf32> to vector<8x32xf32>
    %92 = vector.extract_strided_slice %89 {offsets = [0, 32], sizes = [8, 32], strides = [1, 1]} : vector<8x128xf32> to vector<8x32xf32>
    %93 = vector.extract_strided_slice %90 {offsets = [0, 64], sizes = [8, 32], strides = [1, 1]} : vector<8x128xf32> to vector<8x32xf32>
    %94 = vector.extract_strided_slice %89 {offsets = [0, 96], sizes = [8, 32], strides = [1, 1]} : vector<8x128xf32> to vector<8x32xf32>
    %95 = arith.mulf %92, %77 : vector<8x32xf32>
    %96 = arith.mulf %91, %93 : vector<8x32xf32>
    %97 = arith.addf %95, %96 : vector<8x32xf32>
    %98 = math.tanh %97 : vector<8x32xf32>
    %99 = arith.mulf %94, %98 : vector<8x32xf32>
    %c24_34 = arith.constant 24 : index
    %c0_35 = arith.constant 0 : index
    %100 = vector.load %arg16[%c24_34, %c0_35] : memref<64x32xf32, #tpu.memory_space<vmem>>, vector<8x32xf32>
    tpu.vector_store %arg16[%c24_34, %c0_35], %99 {strides = array<i32>} : memref<64x32xf32, #tpu.memory_space<vmem>>, vector<8x32xf32>,
    %c32 = arith.constant 32 : index
    %c0_36 = arith.constant 0 : index
    %101 = vector.load %arg15[%c32, %c0_36] : memref<64x128xf32, #tpu.memory_space<vmem>>, vector<8x128xf32>
    %102 = arith.truncf %99 : vector<8x32xf32> to vector<8x32xbf16>
    %cst_37 = arith.constant dense<0.000000e+00> : vector<8x128xf32>
    %103 = tpu.matmul %102, %18, %cst_37 {dimension_numbers = #tpu.dot_dimension_numbers<[1], [0], [0], [1], [0, 0, 1, 1], [], []>} : vector<8x32xbf16>, vector<32x128xbf16>, vector<8x128xf32> -> vector<8x128xf32>
    %104 = arith.addf %101, %103 : vector<8x128xf32>
    %105 = arith.negf %104 : vector<8x128xf32>
    %106 = math.exp %105 : vector<8x128xf32>
    %cst_38 = arith.constant 1.000000e+00 : f32
    %107 = vector.broadcast %cst_38 : f32 to vector<8x128xf32>
    %108 = arith.addf %107, %106 : vector<8x128xf32>
    %109 = arith.divf %107, %108 : vector<8x128xf32>
    %110 = math.tanh %104 : vector<8x128xf32>
    %111 = vector.extract_strided_slice %109 {offsets = [0, 0], sizes = [8, 32], strides = [1, 1]} : vector<8x128xf32> to vector<8x32xf32>
    %112 = vector.extract_strided_slice %109 {offsets = [0, 32], sizes = [8, 32], strides = [1, 1]} : vector<8x128xf32> to vector<8x32xf32>
    %113 = vector.extract_strided_slice %110 {offsets = [0, 64], sizes = [8, 32], strides = [1, 1]} : vector<8x128xf32> to vector<8x32xf32>
    %114 = vector.extract_strided_slice %109 {offsets = [0, 96], sizes = [8, 32], strides = [1, 1]} : vector<8x128xf32> to vector<8x32xf32>
    %115 = arith.mulf %112, %97 : vector<8x32xf32>
    %116 = arith.mulf %111, %113 : vector<8x32xf32>
    %117 = arith.addf %115, %116 : vector<8x32xf32>
    %118 = math.tanh %117 : vector<8x32xf32>
    %119 = arith.mulf %114, %118 : vector<8x32xf32>
    %c32_39 = arith.constant 32 : index
    %c0_40 = arith.constant 0 : index
    %120 = vector.load %arg16[%c32_39, %c0_40] : memref<64x32xf32, #tpu.memory_space<vmem>>, vector<8x32xf32>
    tpu.vector_store %arg16[%c32_39, %c0_40], %119 {strides = array<i32>} : memref<64x32xf32, #tpu.memory_space<vmem>>, vector<8x32xf32>,
    %c40 = arith.constant 40 : index
    %c0_41 = arith.constant 0 : index
    %121 = vector.load %arg15[%c40, %c0_41] : memref<64x128xf32, #tpu.memory_space<vmem>>, vector<8x128xf32>
    %122 = arith.truncf %119 : vector<8x32xf32> to vector<8x32xbf16>
    %cst_42 = arith.constant dense<0.000000e+00> : vector<8x128xf32>
    %123 = tpu.matmul %122, %18, %cst_42 {dimension_numbers = #tpu.dot_dimension_numbers<[1], [0], [0], [1], [0, 0, 1, 1], [], []>} : vector<8x32xbf16>, vector<32x128xbf16>, vector<8x128xf32> -> vector<8x128xf32>
    %124 = arith.addf %121, %123 : vector<8x128xf32>
    %125 = arith.negf %124 : vector<8x128xf32>
    %126 = math.exp %125 : vector<8x128xf32>
    %cst_43 = arith.constant 1.000000e+00 : f32
    %127 = vector.broadcast %cst_43 : f32 to vector<8x128xf32>
    %128 = arith.addf %127, %126 : vector<8x128xf32>
    %129 = arith.divf %127, %128 : vector<8x128xf32>
    %130 = math.tanh %124 : vector<8x128xf32>
    %131 = vector.extract_strided_slice %129 {offsets = [0, 0], sizes = [8, 32], strides = [1, 1]} : vector<8x128xf32> to vector<8x32xf32>
    %132 = vector.extract_strided_slice %129 {offsets = [0, 32], sizes = [8, 32], strides = [1, 1]} : vector<8x128xf32> to vector<8x32xf32>
    %133 = vector.extract_strided_slice %130 {offsets = [0, 64], sizes = [8, 32], strides = [1, 1]} : vector<8x128xf32> to vector<8x32xf32>
    %134 = vector.extract_strided_slice %129 {offsets = [0, 96], sizes = [8, 32], strides = [1, 1]} : vector<8x128xf32> to vector<8x32xf32>
    %135 = arith.mulf %132, %117 : vector<8x32xf32>
    %136 = arith.mulf %131, %133 : vector<8x32xf32>
    %137 = arith.addf %135, %136 : vector<8x32xf32>
    %138 = math.tanh %137 : vector<8x32xf32>
    %139 = arith.mulf %134, %138 : vector<8x32xf32>
    %c40_44 = arith.constant 40 : index
    %c0_45 = arith.constant 0 : index
    %140 = vector.load %arg16[%c40_44, %c0_45] : memref<64x32xf32, #tpu.memory_space<vmem>>, vector<8x32xf32>
    tpu.vector_store %arg16[%c40_44, %c0_45], %139 {strides = array<i32>} : memref<64x32xf32, #tpu.memory_space<vmem>>, vector<8x32xf32>,
    %c48 = arith.constant 48 : index
    %c0_46 = arith.constant 0 : index
    %141 = vector.load %arg15[%c48, %c0_46] : memref<64x128xf32, #tpu.memory_space<vmem>>, vector<8x128xf32>
    %142 = arith.truncf %139 : vector<8x32xf32> to vector<8x32xbf16>
    %cst_47 = arith.constant dense<0.000000e+00> : vector<8x128xf32>
    %143 = tpu.matmul %142, %18, %cst_47 {dimension_numbers = #tpu.dot_dimension_numbers<[1], [0], [0], [1], [0, 0, 1, 1], [], []>} : vector<8x32xbf16>, vector<32x128xbf16>, vector<8x128xf32> -> vector<8x128xf32>
    %144 = arith.addf %141, %143 : vector<8x128xf32>
    %145 = arith.negf %144 : vector<8x128xf32>
    %146 = math.exp %145 : vector<8x128xf32>
    %cst_48 = arith.constant 1.000000e+00 : f32
    %147 = vector.broadcast %cst_48 : f32 to vector<8x128xf32>
    %148 = arith.addf %147, %146 : vector<8x128xf32>
    %149 = arith.divf %147, %148 : vector<8x128xf32>
    %150 = math.tanh %144 : vector<8x128xf32>
    %151 = vector.extract_strided_slice %149 {offsets = [0, 0], sizes = [8, 32], strides = [1, 1]} : vector<8x128xf32> to vector<8x32xf32>
    %152 = vector.extract_strided_slice %149 {offsets = [0, 32], sizes = [8, 32], strides = [1, 1]} : vector<8x128xf32> to vector<8x32xf32>
    %153 = vector.extract_strided_slice %150 {offsets = [0, 64], sizes = [8, 32], strides = [1, 1]} : vector<8x128xf32> to vector<8x32xf32>
    %154 = vector.extract_strided_slice %149 {offsets = [0, 96], sizes = [8, 32], strides = [1, 1]} : vector<8x128xf32> to vector<8x32xf32>
    %155 = arith.mulf %152, %137 : vector<8x32xf32>
    %156 = arith.mulf %151, %153 : vector<8x32xf32>
    %157 = arith.addf %155, %156 : vector<8x32xf32>
    %158 = math.tanh %157 : vector<8x32xf32>
    %159 = arith.mulf %154, %158 : vector<8x32xf32>
    %c48_49 = arith.constant 48 : index
    %c0_50 = arith.constant 0 : index
    %160 = vector.load %arg16[%c48_49, %c0_50] : memref<64x32xf32, #tpu.memory_space<vmem>>, vector<8x32xf32>
    tpu.vector_store %arg16[%c48_49, %c0_50], %159 {strides = array<i32>} : memref<64x32xf32, #tpu.memory_space<vmem>>, vector<8x32xf32>,
    %c56 = arith.constant 56 : index
    %c0_51 = arith.constant 0 : index
    %161 = vector.load %arg15[%c56, %c0_51] : memref<64x128xf32, #tpu.memory_space<vmem>>, vector<8x128xf32>
    %162 = arith.truncf %159 : vector<8x32xf32> to vector<8x32xbf16>
    %cst_52 = arith.constant dense<0.000000e+00> : vector<8x128xf32>
    %163 = tpu.matmul %162, %18, %cst_52 {dimension_numbers = #tpu.dot_dimension_numbers<[1], [0], [0], [1], [0, 0, 1, 1], [], []>} : vector<8x32xbf16>, vector<32x128xbf16>, vector<8x128xf32> -> vector<8x128xf32>
    %164 = arith.addf %161, %163 : vector<8x128xf32>
    %165 = arith.negf %164 : vector<8x128xf32>
    %166 = math.exp %165 : vector<8x128xf32>
    %cst_53 = arith.constant 1.000000e+00 : f32
    %167 = vector.broadcast %cst_53 : f32 to vector<8x128xf32>
    %168 = arith.addf %167, %166 : vector<8x128xf32>
    %169 = arith.divf %167, %168 : vector<8x128xf32>
    %170 = math.tanh %164 : vector<8x128xf32>
    %171 = vector.extract_strided_slice %169 {offsets = [0, 0], sizes = [8, 32], strides = [1, 1]} : vector<8x128xf32> to vector<8x32xf32>
    %172 = vector.extract_strided_slice %169 {offsets = [0, 32], sizes = [8, 32], strides = [1, 1]} : vector<8x128xf32> to vector<8x32xf32>
    %173 = vector.extract_strided_slice %170 {offsets = [0, 64], sizes = [8, 32], strides = [1, 1]} : vector<8x128xf32> to vector<8x32xf32>
    %174 = vector.extract_strided_slice %169 {offsets = [0, 96], sizes = [8, 32], strides = [1, 1]} : vector<8x128xf32> to vector<8x32xf32>
    %175 = arith.mulf %172, %157 : vector<8x32xf32>
    %176 = arith.mulf %171, %173 : vector<8x32xf32>
    %177 = arith.addf %175, %176 : vector<8x32xf32>
    %178 = math.tanh %177 : vector<8x32xf32>
    %179 = arith.mulf %174, %178 : vector<8x32xf32>
    %c56_54 = arith.constant 56 : index
    %c0_55 = arith.constant 0 : index
    %180 = vector.load %arg16[%c56_54, %c0_55] : memref<64x32xf32, #tpu.memory_space<vmem>>, vector<8x32xf32>
    tpu.vector_store %arg16[%c56_54, %c0_55], %179 {strides = array<i32>} : memref<64x32xf32, #tpu.memory_space<vmem>>, vector<8x32xf32>,
    %181 = math.tanh %179 : vector<8x32xf32>
    %182 = arith.truncf %181 : vector<8x32xf32> to vector<8x32xbf16>
    %c0_56 = arith.constant 0 : index
    %c0_57 = arith.constant 0 : index
    %183 = vector.load %arg9[%c0_56, %c0_57] : memref<32x32xbf16, #tpu.memory_space<vmem>>, vector<32x32xbf16>
    %cst_58 = arith.constant dense<0.000000e+00> : vector<8x32xf32>
    %184 = tpu.matmul %182, %183, %cst_58 {dimension_numbers = #tpu.dot_dimension_numbers<[1], [0], [0], [1], [0, 0, 1, 1], [], []>} : vector<8x32xbf16>, vector<32x32xbf16>, vector<8x32xf32> -> vector<8x32xf32>
    %185 = arith.addf %10, %184 : vector<8x32xf32>
    %186 = math.tanh %177 : vector<8x32xf32>
    %187 = arith.truncf %186 : vector<8x32xf32> to vector<8x32xbf16>
    %c0_59 = arith.constant 0 : index
    %c0_60 = arith.constant 0 : index
    %188 = vector.load %arg10[%c0_59, %c0_60] : memref<32x32xbf16, #tpu.memory_space<vmem>>, vector<32x32xbf16>
    %cst_61 = arith.constant dense<0.000000e+00> : vector<8x32xf32>
    %189 = tpu.matmul %187, %188, %cst_61 {dimension_numbers = #tpu.dot_dimension_numbers<[1], [0], [0], [1], [0, 0, 1, 1], [], []>} : vector<8x32xbf16>, vector<32x32xbf16>, vector<8x32xf32> -> vector<8x32xf32>
    %190 = arith.addf %185, %189 : vector<8x32xf32>
    %c0_62 = arith.constant 0 : index
    %c0_63 = arith.constant 0 : index
    %191 = vector.load %arg16[%c0_62, %c0_63] : memref<64x32xf32, #tpu.memory_space<vmem>>, vector<64x32xf32>
    %192 = arith.truncf %191 : vector<64x32xf32> to vector<64x32xbf16>
    %c0_64 = arith.constant 0 : index
    %c0_65 = arith.constant 0 : index
    %193 = vector.load %arg6[%c0_64, %c0_65] : memref<32x128xbf16, #tpu.memory_space<vmem>>, vector<32x128xbf16>
    %cst_66 = arith.constant dense<0.000000e+00> : vector<64x128xf32>
    %194 = tpu.matmul %192, %193, %cst_66 {dimension_numbers = #tpu.dot_dimension_numbers<[1], [0], [0], [1], [0, 0, 1, 1], [], []>} : vector<64x32xbf16>, vector<32x128xbf16>, vector<64x128xf32> -> vector<64x128xf32>
    %c0_67 = arith.constant 0 : index
    %c0_68 = arith.constant 0 : index
    %195 = vector.load %arg8[%c0_67, %c0_68] : memref<1x128xf32, #tpu.memory_space<vmem>>, vector<1x128xf32>
    %196 = vector.broadcast %195 : vector<1x128xf32> to vector<64x128xf32>
    %197 = arith.addf %194, %196 : vector<64x128xf32>
    %c0_69 = arith.constant 0 : index
    %c0_70 = arith.constant 0 : index
    %198 = vector.load %arg15[%c0_69, %c0_70] : memref<64x128xf32, #tpu.memory_space<vmem>>, vector<64x128xf32>
    tpu.vector_store %arg15[%c0_69, %c0_70], %197 {strides = array<i32>} : memref<64x128xf32, #tpu.memory_space<vmem>>, vector<64x128xf32>,
    %c0_71 = arith.constant 0 : index
    %c0_72 = arith.constant 0 : index
    %199 = vector.load %arg7[%c0_71, %c0_72] : memref<32x128xbf16, #tpu.memory_space<vmem>>, vector<32x128xbf16>
    %cst_73 = arith.constant 0.000000e+00 : f32
    %200 = vector.broadcast %cst_73 : f32 to vector<8x32xf32>
    %cst_74 = arith.constant 0.000000e+00 : f32
    %201 = vector.broadcast %cst_74 : f32 to vector<8x32xf32>
    %c0_75 = arith.constant 0 : index
    %c0_76 = arith.constant 0 : index
    %202 = vector.load %arg15[%c0_75, %c0_76] : memref<64x128xf32, #tpu.memory_space<vmem>>, vector<8x128xf32>
    %203 = arith.truncf %200 : vector<8x32xf32> to vector<8x32xbf16>
    %cst_77 = arith.constant dense<0.000000e+00> : vector<8x128xf32>
    %204 = tpu.matmul %203, %199, %cst_77 {dimension_numbers = #tpu.dot_dimension_numbers<[1], [0], [0], [1], [0, 0, 1, 1], [], []>} : vector<8x32xbf16>, vector<32x128xbf16>, vector<8x128xf32> -> vector<8x128xf32>
    %205 = arith.addf %202, %204 : vector<8x128xf32>
    %206 = arith.negf %205 : vector<8x128xf32>
    %207 = math.exp %206 : vector<8x128xf32>
    %cst_78 = arith.constant 1.000000e+00 : f32
    %208 = vector.broadcast %cst_78 : f32 to vector<8x128xf32>
    %209 = arith.addf %208, %207 : vector<8x128xf32>
    %210 = arith.divf %208, %209 : vector<8x128xf32>
    %211 = math.tanh %205 : vector<8x128xf32>
    %212 = vector.extract_strided_slice %210 {offsets = [0, 0], sizes = [8, 32], strides = [1, 1]} : vector<8x128xf32> to vector<8x32xf32>
    %213 = vector.extract_strided_slice %210 {offsets = [0, 32], sizes = [8, 32], strides = [1, 1]} : vector<8x128xf32> to vector<8x32xf32>
    %214 = vector.extract_strided_slice %211 {offsets = [0, 64], sizes = [8, 32], strides = [1, 1]} : vector<8x128xf32> to vector<8x32xf32>
    %215 = vector.extract_strided_slice %210 {offsets = [0, 96], sizes = [8, 32], strides = [1, 1]} : vector<8x128xf32> to vector<8x32xf32>
    %216 = arith.mulf %213, %201 : vector<8x32xf32>
    %217 = arith.mulf %212, %214 : vector<8x32xf32>
    %218 = arith.addf %216, %217 : vector<8x32xf32>
    %219 = math.tanh %218 : vector<8x32xf32>
    %220 = arith.mulf %215, %219 : vector<8x32xf32>
    %c8_79 = arith.constant 8 : index
    %c0_80 = arith.constant 0 : index
    %221 = vector.load %arg15[%c8_79, %c0_80] : memref<64x128xf32, #tpu.memory_space<vmem>>, vector<8x128xf32>
    %222 = arith.truncf %220 : vector<8x32xf32> to vector<8x32xbf16>
    %cst_81 = arith.constant dense<0.000000e+00> : vector<8x128xf32>
    %223 = tpu.matmul %222, %199, %cst_81 {dimension_numbers = #tpu.dot_dimension_numbers<[1], [0], [0], [1], [0, 0, 1, 1], [], []>} : vector<8x32xbf16>, vector<32x128xbf16>, vector<8x128xf32> -> vector<8x128xf32>
    %224 = arith.addf %221, %223 : vector<8x128xf32>
    %225 = arith.negf %224 : vector<8x128xf32>
    %226 = math.exp %225 : vector<8x128xf32>
    %cst_82 = arith.constant 1.000000e+00 : f32
    %227 = vector.broadcast %cst_82 : f32 to vector<8x128xf32>
    %228 = arith.addf %227, %226 : vector<8x128xf32>
    %229 = arith.divf %227, %228 : vector<8x128xf32>
    %230 = math.tanh %224 : vector<8x128xf32>
    %231 = vector.extract_strided_slice %229 {offsets = [0, 0], sizes = [8, 32], strides = [1, 1]} : vector<8x128xf32> to vector<8x32xf32>
    %232 = vector.extract_strided_slice %229 {offsets = [0, 32], sizes = [8, 32], strides = [1, 1]} : vector<8x128xf32> to vector<8x32xf32>
    %233 = vector.extract_strided_slice %230 {offsets = [0, 64], sizes = [8, 32], strides = [1, 1]} : vector<8x128xf32> to vector<8x32xf32>
    %234 = vector.extract_strided_slice %229 {offsets = [0, 96], sizes = [8, 32], strides = [1, 1]} : vector<8x128xf32> to vector<8x32xf32>
    %235 = arith.mulf %232, %218 : vector<8x32xf32>
    %236 = arith.mulf %231, %233 : vector<8x32xf32>
    %237 = arith.addf %235, %236 : vector<8x32xf32>
    %238 = math.tanh %237 : vector<8x32xf32>
    %239 = arith.mulf %234, %238 : vector<8x32xf32>
    %c16_83 = arith.constant 16 : index
    %c0_84 = arith.constant 0 : index
    %240 = vector.load %arg15[%c16_83, %c0_84] : memref<64x128xf32, #tpu.memory_space<vmem>>, vector<8x128xf32>
    %241 = arith.truncf %239 : vector<8x32xf32> to vector<8x32xbf16>
    %cst_85 = arith.constant dense<0.000000e+00> : vector<8x128xf32>
    %242 = tpu.matmul %241, %199, %cst_85 {dimension_numbers = #tpu.dot_dimension_numbers<[1], [0], [0], [1], [0, 0, 1, 1], [], []>} : vector<8x32xbf16>, vector<32x128xbf16>, vector<8x128xf32> -> vector<8x128xf32>
    %243 = arith.addf %240, %242 : vector<8x128xf32>
    %244 = arith.negf %243 : vector<8x128xf32>
    %245 = math.exp %244 : vector<8x128xf32>
    %cst_86 = arith.constant 1.000000e+00 : f32
    %246 = vector.broadcast %cst_86 : f32 to vector<8x128xf32>
    %247 = arith.addf %246, %245 : vector<8x128xf32>
    %248 = arith.divf %246, %247 : vector<8x128xf32>
    %249 = math.tanh %243 : vector<8x128xf32>
    %250 = vector.extract_strided_slice %248 {offsets = [0, 0], sizes = [8, 32], strides = [1, 1]} : vector<8x128xf32> to vector<8x32xf32>
    %251 = vector.extract_strided_slice %248 {offsets = [0, 32], sizes = [8, 32], strides = [1, 1]} : vector<8x128xf32> to vector<8x32xf32>
    %252 = vector.extract_strided_slice %249 {offsets = [0, 64], sizes = [8, 32], strides = [1, 1]} : vector<8x128xf32> to vector<8x32xf32>
    %253 = vector.extract_strided_slice %248 {offsets = [0, 96], sizes = [8, 32], strides = [1, 1]} : vector<8x128xf32> to vector<8x32xf32>
    %254 = arith.mulf %251, %237 : vector<8x32xf32>
    %255 = arith.mulf %250, %252 : vector<8x32xf32>
    %256 = arith.addf %254, %255 : vector<8x32xf32>
    %257 = math.tanh %256 : vector<8x32xf32>
    %258 = arith.mulf %253, %257 : vector<8x32xf32>
    %c24_87 = arith.constant 24 : index
    %c0_88 = arith.constant 0 : index
    %259 = vector.load %arg15[%c24_87, %c0_88] : memref<64x128xf32, #tpu.memory_space<vmem>>, vector<8x128xf32>
    %260 = arith.truncf %258 : vector<8x32xf32> to vector<8x32xbf16>
    %cst_89 = arith.constant dense<0.000000e+00> : vector<8x128xf32>
    %261 = tpu.matmul %260, %199, %cst_89 {dimension_numbers = #tpu.dot_dimension_numbers<[1], [0], [0], [1], [0, 0, 1, 1], [], []>} : vector<8x32xbf16>, vector<32x128xbf16>, vector<8x128xf32> -> vector<8x128xf32>
    %262 = arith.addf %259, %261 : vector<8x128xf32>
    %263 = arith.negf %262 : vector<8x128xf32>
    %264 = math.exp %263 : vector<8x128xf32>
    %cst_90 = arith.constant 1.000000e+00 : f32
    %265 = vector.broadcast %cst_90 : f32 to vector<8x128xf32>
    %266 = arith.addf %265, %264 : vector<8x128xf32>
    %267 = arith.divf %265, %266 : vector<8x128xf32>
    %268 = math.tanh %262 : vector<8x128xf32>
    %269 = vector.extract_strided_slice %267 {offsets = [0, 0], sizes = [8, 32], strides = [1, 1]} : vector<8x128xf32> to vector<8x32xf32>
    %270 = vector.extract_strided_slice %267 {offsets = [0, 32], sizes = [8, 32], strides = [1, 1]} : vector<8x128xf32> to vector<8x32xf32>
    %271 = vector.extract_strided_slice %268 {offsets = [0, 64], sizes = [8, 32], strides = [1, 1]} : vector<8x128xf32> to vector<8x32xf32>
    %272 = vector.extract_strided_slice %267 {offsets = [0, 96], sizes = [8, 32], strides = [1, 1]} : vector<8x128xf32> to vector<8x32xf32>
    %273 = arith.mulf %270, %256 : vector<8x32xf32>
    %274 = arith.mulf %269, %271 : vector<8x32xf32>
    %275 = arith.addf %273, %274 : vector<8x32xf32>
    %276 = math.tanh %275 : vector<8x32xf32>
    %277 = arith.mulf %272, %276 : vector<8x32xf32>
    %c32_91 = arith.constant 32 : index
    %c0_92 = arith.constant 0 : index
    %278 = vector.load %arg15[%c32_91, %c0_92] : memref<64x128xf32, #tpu.memory_space<vmem>>, vector<8x128xf32>
    %279 = arith.truncf %277 : vector<8x32xf32> to vector<8x32xbf16>
    %cst_93 = arith.constant dense<0.000000e+00> : vector<8x128xf32>
    %280 = tpu.matmul %279, %199, %cst_93 {dimension_numbers = #tpu.dot_dimension_numbers<[1], [0], [0], [1], [0, 0, 1, 1], [], []>} : vector<8x32xbf16>, vector<32x128xbf16>, vector<8x128xf32> -> vector<8x128xf32>
    %281 = arith.addf %278, %280 : vector<8x128xf32>
    %282 = arith.negf %281 : vector<8x128xf32>
    %283 = math.exp %282 : vector<8x128xf32>
    %cst_94 = arith.constant 1.000000e+00 : f32
    %284 = vector.broadcast %cst_94 : f32 to vector<8x128xf32>
    %285 = arith.addf %284, %283 : vector<8x128xf32>
    %286 = arith.divf %284, %285 : vector<8x128xf32>
    %287 = math.tanh %281 : vector<8x128xf32>
    %288 = vector.extract_strided_slice %286 {offsets = [0, 0], sizes = [8, 32], strides = [1, 1]} : vector<8x128xf32> to vector<8x32xf32>
    %289 = vector.extract_strided_slice %286 {offsets = [0, 32], sizes = [8, 32], strides = [1, 1]} : vector<8x128xf32> to vector<8x32xf32>
    %290 = vector.extract_strided_slice %287 {offsets = [0, 64], sizes = [8, 32], strides = [1, 1]} : vector<8x128xf32> to vector<8x32xf32>
    %291 = vector.extract_strided_slice %286 {offsets = [0, 96], sizes = [8, 32], strides = [1, 1]} : vector<8x128xf32> to vector<8x32xf32>
    %292 = arith.mulf %289, %275 : vector<8x32xf32>
    %293 = arith.mulf %288, %290 : vector<8x32xf32>
    %294 = arith.addf %292, %293 : vector<8x32xf32>
    %295 = math.tanh %294 : vector<8x32xf32>
    %296 = arith.mulf %291, %295 : vector<8x32xf32>
    %c40_95 = arith.constant 40 : index
    %c0_96 = arith.constant 0 : index
    %297 = vector.load %arg15[%c40_95, %c0_96] : memref<64x128xf32, #tpu.memory_space<vmem>>, vector<8x128xf32>
    %298 = arith.truncf %296 : vector<8x32xf32> to vector<8x32xbf16>
    %cst_97 = arith.constant dense<0.000000e+00> : vector<8x128xf32>
    %299 = tpu.matmul %298, %199, %cst_97 {dimension_numbers = #tpu.dot_dimension_numbers<[1], [0], [0], [1], [0, 0, 1, 1], [], []>} : vector<8x32xbf16>, vector<32x128xbf16>, vector<8x128xf32> -> vector<8x128xf32>
    %300 = arith.addf %297, %299 : vector<8x128xf32>
    %301 = arith.negf %300 : vector<8x128xf32>
    %302 = math.exp %301 : vector<8x128xf32>
    %cst_98 = arith.constant 1.000000e+00 : f32
    %303 = vector.broadcast %cst_98 : f32 to vector<8x128xf32>
    %304 = arith.addf %303, %302 : vector<8x128xf32>
    %305 = arith.divf %303, %304 : vector<8x128xf32>
    %306 = math.tanh %300 : vector<8x128xf32>
    %307 = vector.extract_strided_slice %305 {offsets = [0, 0], sizes = [8, 32], strides = [1, 1]} : vector<8x128xf32> to vector<8x32xf32>
    %308 = vector.extract_strided_slice %305 {offsets = [0, 32], sizes = [8, 32], strides = [1, 1]} : vector<8x128xf32> to vector<8x32xf32>
    %309 = vector.extract_strided_slice %306 {offsets = [0, 64], sizes = [8, 32], strides = [1, 1]} : vector<8x128xf32> to vector<8x32xf32>
    %310 = vector.extract_strided_slice %305 {offsets = [0, 96], sizes = [8, 32], strides = [1, 1]} : vector<8x128xf32> to vector<8x32xf32>
    %311 = arith.mulf %308, %294 : vector<8x32xf32>
    %312 = arith.mulf %307, %309 : vector<8x32xf32>
    %313 = arith.addf %311, %312 : vector<8x32xf32>
    %314 = math.tanh %313 : vector<8x32xf32>
    %315 = arith.mulf %310, %314 : vector<8x32xf32>
    %c48_99 = arith.constant 48 : index
    %c0_100 = arith.constant 0 : index
    %316 = vector.load %arg15[%c48_99, %c0_100] : memref<64x128xf32, #tpu.memory_space<vmem>>, vector<8x128xf32>
    %317 = arith.truncf %315 : vector<8x32xf32> to vector<8x32xbf16>
    %cst_101 = arith.constant dense<0.000000e+00> : vector<8x128xf32>
    %318 = tpu.matmul %317, %199, %cst_101 {dimension_numbers = #tpu.dot_dimension_numbers<[1], [0], [0], [1], [0, 0, 1, 1], [], []>} : vector<8x32xbf16>, vector<32x128xbf16>, vector<8x128xf32> -> vector<8x128xf32>
    %319 = arith.addf %316, %318 : vector<8x128xf32>
    %320 = arith.negf %319 : vector<8x128xf32>
    %321 = math.exp %320 : vector<8x128xf32>
    %cst_102 = arith.constant 1.000000e+00 : f32
    %322 = vector.broadcast %cst_102 : f32 to vector<8x128xf32>
    %323 = arith.addf %322, %321 : vector<8x128xf32>
    %324 = arith.divf %322, %323 : vector<8x128xf32>
    %325 = math.tanh %319 : vector<8x128xf32>
    %326 = vector.extract_strided_slice %324 {offsets = [0, 0], sizes = [8, 32], strides = [1, 1]} : vector<8x128xf32> to vector<8x32xf32>
    %327 = vector.extract_strided_slice %324 {offsets = [0, 32], sizes = [8, 32], strides = [1, 1]} : vector<8x128xf32> to vector<8x32xf32>
    %328 = vector.extract_strided_slice %325 {offsets = [0, 64], sizes = [8, 32], strides = [1, 1]} : vector<8x128xf32> to vector<8x32xf32>
    %329 = vector.extract_strided_slice %324 {offsets = [0, 96], sizes = [8, 32], strides = [1, 1]} : vector<8x128xf32> to vector<8x32xf32>
    %330 = arith.mulf %327, %313 : vector<8x32xf32>
    %331 = arith.mulf %326, %328 : vector<8x32xf32>
    %332 = arith.addf %330, %331 : vector<8x32xf32>
    %333 = math.tanh %332 : vector<8x32xf32>
    %334 = arith.mulf %329, %333 : vector<8x32xf32>
    %c56_103 = arith.constant 56 : index
    %c0_104 = arith.constant 0 : index
    %335 = vector.load %arg15[%c56_103, %c0_104] : memref<64x128xf32, #tpu.memory_space<vmem>>, vector<8x128xf32>
    %336 = arith.truncf %334 : vector<8x32xf32> to vector<8x32xbf16>
    %cst_105 = arith.constant dense<0.000000e+00> : vector<8x128xf32>
    %337 = tpu.matmul %336, %199, %cst_105 {dimension_numbers = #tpu.dot_dimension_numbers<[1], [0], [0], [1], [0, 0, 1, 1], [], []>} : vector<8x32xbf16>, vector<32x128xbf16>, vector<8x128xf32> -> vector<8x128xf32>
    %338 = arith.addf %335, %337 : vector<8x128xf32>
    %339 = arith.negf %338 : vector<8x128xf32>
    %340 = math.exp %339 : vector<8x128xf32>
    %cst_106 = arith.constant 1.000000e+00 : f32
    %341 = vector.broadcast %cst_106 : f32 to vector<8x128xf32>
    %342 = arith.addf %341, %340 : vector<8x128xf32>
    %343 = arith.divf %341, %342 : vector<8x128xf32>
    %344 = math.tanh %338 : vector<8x128xf32>
    %345 = vector.extract_strided_slice %343 {offsets = [0, 0], sizes = [8, 32], strides = [1, 1]} : vector<8x128xf32> to vector<8x32xf32>
    %346 = vector.extract_strided_slice %343 {offsets = [0, 32], sizes = [8, 32], strides = [1, 1]} : vector<8x128xf32> to vector<8x32xf32>
    %347 = vector.extract_strided_slice %344 {offsets = [0, 64], sizes = [8, 32], strides = [1, 1]} : vector<8x128xf32> to vector<8x32xf32>
    %348 = vector.extract_strided_slice %343 {offsets = [0, 96], sizes = [8, 32], strides = [1, 1]} : vector<8x128xf32> to vector<8x32xf32>
    %349 = arith.mulf %346, %332 : vector<8x32xf32>
    %350 = arith.mulf %345, %347 : vector<8x32xf32>
    %351 = arith.addf %349, %350 : vector<8x32xf32>
    %352 = math.tanh %351 : vector<8x32xf32>
    %353 = arith.mulf %348, %352 : vector<8x32xf32>
    %354 = math.tanh %353 : vector<8x32xf32>
    %355 = arith.truncf %354 : vector<8x32xf32> to vector<8x32xbf16>
    %c0_107 = arith.constant 0 : index
    %c0_108 = arith.constant 0 : index
    %356 = vector.load %arg11[%c0_107, %c0_108] : memref<32x32xbf16, #tpu.memory_space<vmem>>, vector<32x32xbf16>
    %cst_109 = arith.constant dense<0.000000e+00> : vector<8x32xf32>
    %357 = tpu.matmul %355, %356, %cst_109 {dimension_numbers = #tpu.dot_dimension_numbers<[1], [0], [0], [1], [0, 0, 1, 1], [], []>} : vector<8x32xbf16>, vector<32x32xbf16>, vector<8x32xf32> -> vector<8x32xf32>
    %358 = arith.addf %190, %357 : vector<8x32xf32>
    %359 = math.tanh %351 : vector<8x32xf32>
    %360 = arith.truncf %359 : vector<8x32xf32> to vector<8x32xbf16>
    %c0_110 = arith.constant 0 : index
    %c0_111 = arith.constant 0 : index
    %361 = vector.load %arg12[%c0_110, %c0_111] : memref<32x32xbf16, #tpu.memory_space<vmem>>, vector<32x32xbf16>
    %cst_112 = arith.constant dense<0.000000e+00> : vector<8x32xf32>
    %362 = tpu.matmul %360, %361, %cst_112 {dimension_numbers = #tpu.dot_dimension_numbers<[1], [0], [0], [1], [0, 0, 1, 1], [], []>} : vector<8x32xbf16>, vector<32x32xbf16>, vector<8x32xf32> -> vector<8x32xf32>
    %363 = arith.addf %358, %362 : vector<8x32xf32>
    %c0_113 = arith.constant 0 : index
    %c0_114 = arith.constant 0 : index
    %364 = vector.load %arg13[%c0_113, %c0_114] : memref<1x32xf32, #tpu.memory_space<vmem>>, vector<1x32xf32>
    %365 = vector.broadcast %364 : vector<1x32xf32> to vector<8x32xf32>
    %366 = arith.addf %363, %365 : vector<8x32xf32>
    %c0_115 = arith.constant 0 : index
    %c0_116 = arith.constant 0 : index
    %367 = vector.load %arg14[%c0_115, %c0_116] : memref<8x32xf32, #tpu.memory_space<vmem>>, vector<8x32xf32>
    tpu.vector_store %arg14[%c0_115, %c0_116], %366 {strides = array<i32>} : memref<8x32xf32, #tpu.memory_space<vmem>>, vector<8x32xf32>,
    return
  }
  func.func @transform_0(%arg0: i32) -> (i32, i32) {
    %c0_i32 = arith.constant 0 : i32
    %c0_i32_0 = arith.constant 0 : i32
    %c0_i32_1 = arith.constant 0 : i32
    return %c0_i32, %c0_i32_0 : i32, i32
  }
  func.func @transform_1(%arg0: i32) -> (i32, i32) {
    %c0_i32 = arith.constant 0 : i32
    %c0_i32_0 = arith.constant 0 : i32
    %c0_i32_1 = arith.constant 0 : i32
    return %c0_i32, %c0_i32_0 : i32, i32
  }
  func.func @transform_2(%arg0: i32) -> (i32, i32) {
    %c0_i32 = arith.constant 0 : i32
    %c0_i32_0 = arith.constant 0 : i32
    %c0_i32_1 = arith.constant 0 : i32
    return %c0_i32, %c0_i32_0 : i32, i32
  }
  func.func @transform_3(%arg0: i32) -> (i32, i32) {
    %c0_i32 = arith.constant 0 : i32
    %c0_i32_0 = arith.constant 0 : i32
    %c0_i32_1 = arith.constant 0 : i32
    return %c0_i32, %c0_i32_0 : i32, i32
  }
  func.func @transform_4(%arg0: i32) -> (i32, i32) {
    %c0_i32 = arith.constant 0 : i32
    %c0_i32_0 = arith.constant 0 : i32
    %c0_i32_1 = arith.constant 0 : i32
    return %c0_i32, %c0_i32_0 : i32, i32
  }
  func.func @transform_5(%arg0: i32) -> (i32, i32) {
    %c0_i32 = arith.constant 0 : i32
    %c0_i32_0 = arith.constant 0 : i32
    %c0_i32_1 = arith.constant 0 : i32
    return %c0_i32, %c0_i32_0 : i32, i32
  }
  func.func @transform_6(%arg0: i32) -> (i32, i32) {
    %c0_i32 = arith.constant 0 : i32
    %c0_i32_0 = arith.constant 0 : i32
    %c0_i32_1 = arith.constant 0 : i32
    return %c0_i32, %c0_i32_0 : i32, i32
  }
  func.func @transform_7(%arg0: i32) -> (i32, i32) {
    %c0_i32 = arith.constant 0 : i32
    %c0_i32_0 = arith.constant 0 : i32
    %c0_i32_1 = arith.constant 0 : i32
    return %c0_i32, %c0_i32_0 : i32, i32
  }
  func.func @transform_8(%arg0: i32) -> (i32, i32) {
    %c0_i32 = arith.constant 0 : i32
    %c0_i32_0 = arith.constant 0 : i32
    %c0_i32_1 = arith.constant 0 : i32
    return %c0_i32, %c0_i32_0 : i32, i32
  }
  func.func @transform_9(%arg0: i32) -> (i32, i32) {
    %c0_i32 = arith.constant 0 : i32
    %c0_i32_0 = arith.constant 0 : i32
    %c0_i32_1 = arith.constant 0 : i32
    return %c0_i32, %c0_i32_0 : i32, i32
  }
  func.func @transform_10(%arg0: i32) -> (i32, i32) {
    %c0_i32 = arith.constant 0 : i32
    %c0_i32_0 = arith.constant 0 : i32
    %c0_i32_1 = arith.constant 0 : i32
    return %c0_i32, %c0_i32_0 : i32, i32
  }
  func.func @transform_11(%arg0: i32) -> (i32, i32) {
    %c0_i32 = arith.constant 0 : i32
    %c0_i32_0 = arith.constant 0 : i32
    %c0_i32_1 = arith.constant 0 : i32
    return %c0_i32, %c0_i32_0 : i32, i32
  }
  func.func @transform_12(%arg0: i32) -> (i32, i32) {
    %c0_i32 = arith.constant 0 : i32
    %c0_i32_0 = arith.constant 0 : i32
    %c0_i32_1 = arith.constant 0 : i32
    return %c0_i32, %c0_i32_0 : i32, i32
  }
  func.func @transform_13(%arg0: i32) -> (i32, i32) {
    %c0_i32 = arith.constant 0 : i32
    %c0_i32_0 = arith.constant 0 : i32
    %c0_i32_1 = arith.constant 0 : i32
    return %c0_i32, %c0_i32_0 : i32, i32
  }
}

</mosaic_0001>

<llo_original>
// kernel: qst_encoder_forward.1
$region0: #{qst_encoder_forward.1}
  #allocation0 [shape = 'u32[]', space=smem, size = 0x4, offset = 0x4, fixed_abs, tag = 'smem constant byte address 0x4 - core index']
  #allocation1 [shape = 'u32[144,128]{1,0:T(1,128)}', space=vmem, size = 0x12000, scoped, tag = 'internal scratch']
  #allocation2 [shape = 'f32[64,128]{1,0:T(8,128)}', space=vmem, size = 0x8000, scoped, tag = 'scratch operand']
  #allocation3 [shape = 'f32[64,32]{1,0:T(8,128)}', space=vmem, size = 0x8000, scoped, tag = 'scratch operand']
  %s0 = inlined_call_operand.vmem [shape: s32[64,1], index: 0, kind: input, shape index: {}]
  %s1 = inlined_call_operand.vmem [shape: bf16[32,16], index: 1, kind: input, shape index: {}]
  %s2 = inlined_call_operand.vmem [shape: bf16[16,128], index: 2, kind: input, shape index: {}]
  %s3 = inlined_call_operand.vmem [shape: bf16[32,128], index: 3, kind: input, shape index: {}]
  %s4 = inlined_call_operand.vmem [shape: f32[1,128], index: 4, kind: input, shape index: {}]
  %s5 = inlined_call_operand.vmem [shape: bf16[32,128], index: 5, kind: input, shape index: {}]
  %s6 = inlined_call_operand.vmem [shape: bf16[32,128], index: 6, kind: input, shape index: {}]
  %s7 = inlined_call_operand.hbm [shape: f32[1,128], index: 7, kind: input, shape index: {}]
  %s8 = inlined_call_operand.vmem [shape: bf16[32,32], index: 8, kind: input, shape index: {}]
  %s9 = inlined_call_operand.vmem [shape: bf16[32,32], index: 9, kind: input, shape index: {}]
  %s10 = inlined_call_operand.vmem [shape: bf16[32,32], index: 10, kind: input, shape index: {}]
  %s11 = inlined_call_operand.vmem [shape: bf16[32,32], index: 11, kind: input, shape index: {}]
  %s12 = inlined_call_operand.vmem [shape: f32[1,32], index: 12, kind: input, shape index: {}]
  %s13 = inlined_call_operand.vmem [shape: f32[8,32], index: 13, kind: output, shape index: {}]
  %s14 = sld [smem:[#allocation0]]
  $region66: #{qst_encoder_forward.1} parent=0
    _
  %s16 = ssub.s32 1, %s14
  %s17 = scalar_select 0, %s16, %s14
  $region1: #{qst_encoder_forward.1} parent=0
    #allocation4 [shape = 'u8[512]{0}', space=vmem, size = 0x400, scoped, tag = 'input window, operand 7, single buffered']
    #allocation5 [shape = 's32[1]{0}', space=sflag, size = 0x4, scoped, tag = 'scoped memory for qst_encoder_forward.1']
    %18 = vsyncpa [#allocation5], 0
    // Predicated region
    $region2: #{qst_encoder_forward.1} parent=1 // pred_check
      _
    $region3: #{qst_encoder_forward.1} parent=1 // pred_check_branch
      %20 = sbr.rel (0) target = $region5
    $region4: #{qst_encoder_forward.1} parent=1 // pred_region
      _
    $region5: #{qst_encoder_forward.1} parent=1 // pred_fallthru
      _
    // Predicated region
    $region6: #{qst_encoder_forward.1} parent=1 // pred_check
      _
    $region7: #{qst_encoder_forward.1} parent=1 // pred_check_branch
      %22 = sbr.rel (0) target = $region9
    $region8: #{qst_encoder_forward.1} parent=1 // pred_region
      _
    $region9: #{qst_encoder_forward.1} parent=1 // pred_fallthru
      _
    // Predicated region
    $region10: #{qst_encoder_forward.1} parent=1 // pred_check
      _
    $region11: #{qst_encoder_forward.1} parent=1 // pred_check_branch
      %24 = sbr.rel (0) target = $region13
    $region12: #{qst_encoder_forward.1} parent=1 // pred_region
      _
    $region13: #{qst_encoder_forward.1} parent=1 // pred_fallthru
      _
    // Predicated region
    $region14: #{qst_encoder_forward.1} parent=1 // pred_check
      _
    $region15: #{qst_encoder_forward.1} parent=1 // pred_check_branch
      %26 = sbr.rel (0) target = $region17
    $region16: #{qst_encoder_forward.1} parent=1 // pred_region
      _
    $region17: #{qst_encoder_forward.1} parent=1 // pred_fallthru
      _
    // Predicated region
    $region18: #{qst_encoder_forward.1} parent=1 // pred_check
      _
    $region19: #{qst_encoder_forward.1} parent=1 // pred_check_branch
      %28 = sbr.rel (0) target = $region21
    $region20: #{qst_encoder_forward.1} parent=1 // pred_region
      _
    $region21: #{qst_encoder_forward.1} parent=1 // pred_fallthru
      _
    // Predicated region
    $region22: #{qst_encoder_forward.1} parent=1 // pred_check
      _
    $region23: #{qst_encoder_forward.1} parent=1 // pred_check_branch
      %30 = sbr.rel (0) target = $region25
    $region24: #{qst_encoder_forward.1} parent=1 // pred_region
      _
    $region25: #{qst_encoder_forward.1} parent=1 // pred_fallthru
      _
    // Predicated region
    $region26: #{qst_encoder_forward.1} parent=1 // pred_check
      _
    $region27: #{qst_encoder_forward.1} parent=1 // pred_check_branch
      %32 = sbr.rel (0) target = $region29
    $region28: #{qst_encoder_forward.1} parent=1 // pred_region
      _
    $region29: #{qst_encoder_forward.1} parent=1 // pred_fallthru
      _
    // Predicated region
    $region30: #{qst_encoder_forward.1} parent=1 // pred_check
      _
    $region31: #{qst_encoder_forward.1} parent=1 // pred_check_branch
      %34 = sbr.rel (0) target = $region33
    $region32: #{qst_encoder_forward.1} parent=1 // pred_region
      %s36 = ssub.s32 16, 16
      %37 = vsyncadd [#allocation5], %s36
      %s39 = sshll.u32 [#allocation4], 4
      %s40 = int_to_ptr.vmem [resolvable:$true] %s39
      %42 = dma.hbm_to_vmem [thread:$0]  %s7, 16, %s40, [#allocation5]
    $region33: #{qst_encoder_forward.1} parent=1 // pred_fallthru
      _
    // Predicated region
    $region34: #{qst_encoder_forward.1} parent=1 // pred_check
      _
    $region35: #{qst_encoder_forward.1} parent=1 // pred_check_branch
      %44 = sbr.rel (0) target = $region37
    $region36: #{qst_encoder_forward.1} parent=1 // pred_region
      _
    $region37: #{qst_encoder_forward.1} parent=1 // pred_fallthru
      _
    // Predicated region
    $region38: #{qst_encoder_forward.1} parent=1 // pred_check
      _
    $region39: #{qst_encoder_forward.1} parent=1 // pred_check_branch
      %46 = sbr.rel (0) target = $region41
    $region40: #{qst_encoder_forward.1} parent=1 // pred_region
      _
    $region41: #{qst_encoder_forward.1} parent=1 // pred_fallthru
      _
    // Predicated region
    $region42: #{qst_encoder_forward.1} parent=1 // pred_check
      _
    $region43: #{qst_encoder_forward.1} parent=1 // pred_check_branch
      %48 = sbr.rel (0) target = $region45
    $region44: #{qst_encoder_forward.1} parent=1 // pred_region
      _
    $region45: #{qst_encoder_forward.1} parent=1 // pred_fallthru
      _
    // Predicated region
    $region46: #{qst_encoder_forward.1} parent=1 // pred_check
      _
    $region47: #{qst_encoder_forward.1} parent=1 // pred_check_branch
      %50 = sbr.rel (0) target = $region49
    $region48: #{qst_encoder_forward.1} parent=1 // pred_region
      _
    $region49: #{qst_encoder_forward.1} parent=1 // pred_fallthru
      _
    // Predicated region
    $region50: #{qst_encoder_forward.1} parent=1 // pred_check
      _
    $region51: #{qst_encoder_forward.1} parent=1 // pred_check_branch
      %52 = sbr.rel (0) target = $region53
    $region52: #{qst_encoder_forward.1} parent=1 // pred_region
      _
    $region53: #{qst_encoder_forward.1} parent=1 // pred_fallthru
      _
    // Predicated region
    $region54: #{qst_encoder_forward.1} parent=1 // pred_check
      _
    $region55: #{qst_encoder_forward.1} parent=1 // pred_check_branch
      %54 = sbr.rel (0) target = $region57
    $region56: #{qst_encoder_forward.1} parent=1 // pred_region
      %55 = dma.done [#allocation5], 16
    $region57: #{qst_encoder_forward.1} parent=1 // pred_fallthru
      _
    %v57 = vld [vmem:[%s0] sm:$0xff]
    %v58 = vld [vmem:[%s0 + $0x8] sm:$0xff]
    %v59 = vld [vmem:[%s0 + $0x10] sm:$0xff]
    %v60 = vld [vmem:[%s0 + $0x18] sm:$0xff]
    %v61 = vld [vmem:[%s0 + $0x20] sm:$0xff]
    %v62 = vld [vmem:[%s0 + $0x28] sm:$0xff]
    %v63 = vld [vmem:[%s0 + $0x30] sm:$0xff]
    %v64 = vld [vmem:[%s0 + $0x38] sm:$0xff]
    %v65 = vlaneseq
    %v66 = vand.u32 %v65, 127
    %67 = vset.pattern.permute.xlu0 0
    %68 = vperm.xlu0 %67, %v57
    %v69 = vpop.permute.xlu0 %68
    %70 = vset.pattern.permute.xlu0 0
    %71 = vperm.xlu0 %70, %v58
    %v72 = vpop.permute.xlu0 %71
    %73 = vset.pattern.permute.xlu0 0
    %74 = vperm.xlu0 %73, %v59
    %v75 = vpop.permute.xlu0 %74
    %76 = vset.pattern.permute.xlu0 0
    %77 = vperm.xlu0 %76, %v60
    %v78 = vpop.permute.xlu0 %77
    %79 = vset.pattern.permute.xlu0 0
    %80 = vperm.xlu0 %79, %v61
    %v81 = vpop.permute.xlu0 %80
    %82 = vset.pattern.permute.xlu0 0
    %83 = vperm.xlu0 %82, %v62
    %v84 = vpop.permute.xlu0 %83
    %85 = vset.pattern.permute.xlu0 0
    %86 = vperm.xlu0 %85, %v63
    %v87 = vpop.permute.xlu0 %86
    %88 = vset.pattern.permute.xlu0 0
    %89 = vperm.xlu0 %88, %v64
    %v90 = vpop.permute.xlu0 %89
    %vm91 = vcmp.eq.s32.totalorder %v69, %v66
    %vm92 = vcmp.eq.s32.totalorder %v72, %v66
    %vm93 = vcmp.eq.s32.totalorder %v75, %v66
    %vm94 = vcmp.eq.s32.totalorder %v78, %v66
    %vm95 = vcmp.eq.s32.totalorder %v81, %v66
    %vm96 = vcmp.eq.s32.totalorder %v84, %v66
    %vm97 = vcmp.eq.s32.totalorder %v87, %v66
    %vm98 = vcmp.eq.s32.totalorder %v90, %v66
    %v99 = vsel %vm91, 1, 0
    %v100 = vsel %vm92, 1, 0
    %v101 = vsel %vm93, 1, 0
    %v102 = vsel %vm94, 1, 0
    %v103 = vsel %vm95, 1, 0
    %v104 = vsel %vm96, 1, 0
    %v105 = vsel %vm97, 1, 0
    %v106 = vsel %vm98, 1, 0
    %v107 = vcvt.s32.f32 %v99
    %v108 = vcvt.s32.f32 %v100
    %v109 = vcvt.s32.f32 %v101
    %v110 = vcvt.s32.f32 %v102
    %v111 = vcvt.s32.f32 %v103
    %v112 = vcvt.s32.f32 %v104
    %v113 = vcvt.s32.f32 %v105
    %v114 = vcvt.s32.f32 %v106
    %v115 = vpack.c.bf16 %v108, %v107
    %v116 = vpack.c.bf16 %v110, %v109
    %v117 = vpack.c.bf16 %v112, %v111
    %v118 = vpack.c.bf16 %v114, %v113
    %v119 = vld [vmem:[%s1] sm:$0xf]
    %v120 = vld [vmem:[%s1 + $0x4] sm:$0xf]
    %v121 = vld [vmem:[%s1 + $0x8] sm:$0xf]
    %v122 = vld [vmem:[%s1 + $0xc] sm:$0xf]
    %v127 = vunpack.c.l.b16 %v119
    %v128 = vunpack.c.l.b16 %v120
    %v129 = vunpack.c.l.b16 %v121
    %v130 = vunpack.c.l.b16 %v122
    %v131 = vpack.c.b16 %v128, %v127
    %v132 = vpack.c.b16 %v130, %v129
    %vm135 = vcmask 261120
    %v137 = vsel %vm135, %v115, 0
    %v140 = vsel %vm135, %v116, 0
    %v143 = vsel %vm135, %v117, 0
    %v146 = vsel %vm135, %v118, 0
    %148 = vmatprep.subr.bf16.mxu0 0
    %149 = vmatpush1.bf16.msra.mxu0 %v131
    %150 = vmatprep.subr.bf16.mxu0 0
    %151 = vmatpush1.bf16.msra.mxu0 %v132
    %152 = vmatprep.subr.bf16.mxu0 0
    %153 = vmatpush1.bf16.msra.mxu0 0
    %154 = vmatprep.subr.bf16.mxu0 0
    %155 = vmatpush1.bf16.msra.mxu0 0
    %156 = vmatprep.subr.bf16.mxu0 0
    %157 = vmatpush1.bf16.msra.mxu0 0
    %158 = vmatprep.subr.bf16.mxu0 0
    %159 = vmatpush1.bf16.msra.mxu0 0
    %160 = vmatprep.subr.bf16.mxu0 0
    %161 = vmatpush1.bf16.msra.mxu0 0
    %162 = vmatprep.subr.bf16.mxu0 0
    %163 = vmatpush1.bf16.msra.mxu0 0
    %164 = vmatprep.subr.bf16.mxu0 0
    %165 = vmatpush1.bf16.msra.mxu0 0
    %166 = vmatprep.subr.bf16.mxu0 0
    %167 = vmatpush1.bf16.msra.mxu0 0
    %168 = vmatprep.subr.bf16.mxu0 0
    %169 = vmatpush1.bf16.msra.mxu0 0
    %170 = vmatprep.subr.bf16.mxu0 0
    %171 = vmatpush1.bf16.msra.mxu0 0
    %172 = vmatprep.subr.bf16.mxu0 0
    %173 = vmatpush1.bf16.msra.mxu0 0
    %174 = vmatprep.subr.bf16.mxu0 0
    %175 = vmatpush1.bf16.msra.mxu0 0
    %176 = vmatprep.subr.bf16.mxu0 0
    %177 = vmatpush1.bf16.msra.mxu0 0
    %178 = vmatprep.subr.bf16.mxu0 0
    %179 = vmatpush1.bf16.msra.mxu0 0
    %180 = vmatprep.mubr.bf16.mxu0 0
    %181 = vmatmul.mubr.bf16.gmra.mrb[0].mxu0 %v137
    %v182 = vpop.f32.mrb[0].mxu0
    %v183 = vadd.f32 0.0, %v182
    %v184 = vpop.f32.mrb[0].mxu0
    %v185 = vpop.f32.mrb[0].mxu0
    %v186 = vadd.f32 0.0, %v185
    %v187 = vpop.f32.mrb[0].mxu0
    %188 = vmatprep.mubr.bf16.mxu0 0
    %189 = vmatmul.mubr.bf16.gmra.mrb[0].mxu0 %v140
    %v190 = vpop.f32.mrb[0].mxu0
    %v191 = vadd.f32 0.0, %v190
    %v192 = vpop.f32.mrb[0].mxu0
    %v193 = vpop.f32.mrb[0].mxu0
    %v194 = vadd.f32 0.0, %v193
    %v195 = vpop.f32.mrb[0].mxu0
    %196 = vmatprep.mubr.bf16.mxu0 0
    %197 = vmatmul.mubr.bf16.gmra.mrb[0].mxu0 %v143
    %v198 = vpop.f32.mrb[0].mxu0
    %v199 = vadd.f32 0.0, %v198
    %v200 = vpop.f32.mrb[0].mxu0
    %v201 = vpop.f32.mrb[0].mxu0
    %v202 = vadd.f32 0.0, %v201
    %v203 = vpop.f32.mrb[0].mxu0
    %204 = vmatprep.mubr.bf16.mxu0 0
    %205 = vmatmul.mubr.bf16.gmra.mrb[0].mxu0 %v146
    %v206 = vpop.f32.mrb[0].mxu0
    %v207 = vadd.f32 0.0, %v206
    %v208 = vpop.f32.mrb[0].mxu0
    %v209 = vpop.f32.mrb[0].mxu0
    %v210 = vadd.f32 0.0, %v209
    %v211 = vpop.f32.mrb[0].mxu0
    %212 = vdwg.mxu0
    %v213 = vtanh.pop %v183
    %v214 = vtanh.pop %v186
    %v215 = vtanh.pop %v191
    %v216 = vtanh.pop %v194
    %v217 = vtanh.pop %v199
    %v218 = vtanh.pop %v202
    %v219 = vtanh.pop %v207
    %v220 = vtanh.pop %v210
    %v221 = vpack.c.bf16 %v214, %v213
    %v222 = vpack.c.bf16 %v216, %v215
    %v223 = vpack.c.bf16 %v218, %v217
    %v224 = vpack.c.bf16 %v220, %v219
    %v225 = vld [vmem:[%s2] sm:$0xf]
    %v226 = vld [vmem:[%s2 + $0x4] sm:$0xf]
    %v227 = vld [vmem:[%s4] sm:$0x1]
    %v229 = vlaneseq
    %v230 = vshrl.u32 %v229, 7
    %v231 = vsub.s32 0, %v230
    %v232 = vrot.slane %v227, %v231
    %v236 = vunpack.c.l.b16 %v225
    %v237 = vunpack.c.l.b16 %v226
    %v238 = vpack.c.b16 %v237, %v236
    %vm240 = vcmask 130048
    %v242 = vsel %vm240, %v221, 0
    %v245 = vsel %vm240, %v222, 0
    %v248 = vsel %vm240, %v223, 0
    %v251 = vsel %vm240, %v224, 0
    %253 = vmatprep.subr.bf16.mxu0 0
    %254 = vmatpush1.bf16.msra.mxu0 %v238
    %255 = vmatprep.subr.bf16.mxu0 0
    %256 = vmatpush1.bf16.msra.mxu0 0
    %257 = vmatprep.subr.bf16.mxu0 0
    %258 = vmatpush1.bf16.msra.mxu0 0
    %259 = vmatprep.subr.bf16.mxu0 0
    %260 = vmatpush1.bf16.msra.mxu0 0
    %261 = vmatprep.subr.bf16.mxu0 0
    %262 = vmatpush1.bf16.msra.mxu0 0
    %263 = vmatprep.subr.bf16.mxu0 0
    %264 = vmatpush1.bf16.msra.mxu0 0
    %265 = vmatprep.subr.bf16.mxu0 0
    %266 = vmatpush1.bf16.msra.mxu0 0
    %267 = vmatprep.subr.bf16.mxu0 0
    %268 = vmatpush1.bf16.msra.mxu0 0
    %269 = vmatprep.subr.bf16.mxu0 0
    %270 = vmatpush1.bf16.msra.mxu0 0
    %271 = vmatprep.subr.bf16.mxu0 0
    %272 = vmatpush1.bf16.msra.mxu0 0
    %273 = vmatprep.subr.bf16.mxu0 0
    %274 = vmatpush1.bf16.msra.mxu0 0
    %275 = vmatprep.subr.bf16.mxu0 0
    %276 = vmatpush1.bf16.msra.mxu0 0
    %277 = vmatprep.subr.bf16.mxu0 0
    %278 = vmatpush1.bf16.msra.mxu0 0
    %279 = vmatprep.subr.bf16.mxu0 0
    %280 = vmatpush1.bf16.msra.mxu0 0
    %281 = vmatprep.subr.bf16.mxu0 0
    %282 = vmatpush1.bf16.msra.mxu0 0
    %283 = vmatprep.subr.bf16.mxu0 0
    %284 = vmatpush1.bf16.msra.mxu0 0
    %285 = vmatprep.mubr.bf16.mxu0 0
    %286 = vmatmul.mubr.bf16.gmra.mrb[0].mxu0 %v242
    %v287 = vpop.f32.mrb[0].mxu0
    %v288 = vadd.f32 %v232, %v287
    %v289 = vpop.f32.mrb[0].mxu0
    %v290 = vpop.f32.mrb[0].mxu0
    %v291 = vadd.f32 %v232, %v290
    %v292 = vpop.f32.mrb[0].mxu0
    %293 = vmatprep.mubr.bf16.mxu0 0
    %294 = vmatmul.mubr.bf16.gmra.mrb[0].mxu0 %v245
    %v295 = vpop.f32.mrb[0].mxu0
    %v296 = vadd.f32 %v232, %v295
    %v297 = vpop.f32.mrb[0].mxu0
    %v298 = vpop.f32.mrb[0].mxu0
    %v299 = vadd.f32 %v232, %v298
    %v300 = vpop.f32.mrb[0].mxu0
    %301 = vmatprep.mubr.bf16.mxu0 0
    %302 = vmatmul.mubr.bf16.gmra.mrb[0].mxu0 %v248
    %v303 = vpop.f32.mrb[0].mxu0
    %v304 = vadd.f32 %v232, %v303
    %v305 = vpop.f32.mrb[0].mxu0
    %v306 = vpop.f32.mrb[0].mxu0
    %v307 = vadd.f32 %v232, %v306
    %v308 = vpop.f32.mrb[0].mxu0
    %309 = vmatprep.mubr.bf16.mxu0 0
    %310 = vmatmul.mubr.bf16.gmra.mrb[0].mxu0 %v251
    %v311 = vpop.f32.mrb[0].mxu0
    %v312 = vadd.f32 %v232, %v311
    %v313 = vpop.f32.mrb[0].mxu0
    %v314 = vpop.f32.mrb[0].mxu0
    %v315 = vadd.f32 %v232, %v314
    %v316 = vpop.f32.mrb[0].mxu0
    %317 = vdwg.mxu0
    %318 = vst [vmem:[#allocation2] sm:$0xff] %v288
    %319 = vst [vmem:[#allocation2 + $0x8] sm:$0xff] %v291
    %320 = vst [vmem:[#allocation2 + $0x10] sm:$0xff] %v296
    %321 = vst [vmem:[#allocation2 + $0x18] sm:$0xff] %v299
    %322 = vst [vmem:[#allocation2 + $0x20] sm:$0xff] %v304
    %323 = vst [vmem:[#allocation2 + $0x28] sm:$0xff] %v307
    %324 = vst [vmem:[#allocation2 + $0x30] sm:$0xff] %v312
    %325 = vst [vmem:[#allocation2 + $0x38] sm:$0xff] %v315
    %v326 = vld [vmem:[%s3] sm:$0xf]
    %v327 = vld [vmem:[%s3 + $0x4] sm:$0xf]
    %v328 = vld [vmem:[%s3 + $0x8] sm:$0xf]
    %v329 = vld [vmem:[%s3 + $0xc] sm:$0xf]
    %v330 = vld [vmem:[#allocation2] sm:$0xff]
    %v335 = vunpack.c.l.b16 %v326
    %v336 = vunpack.c.l.b16 %v327
    %v337 = vunpack.c.l.b16 %v328
    %v338 = vunpack.c.l.b16 %v329
    %v339 = vpack.c.b16 %v336, %v335
    %v340 = vpack.c.b16 %v338, %v337
    %v344 = vsel %vm135, 0, 0
    %346 = vmatprep.subr.bf16.mxu0 0
    %347 = vmatpush1.bf16.msra.mxu0 %v339
    %348 = vmatprep.subr.bf16.mxu0 0
    %349 = vmatpush1.bf16.msra.mxu0 %v340
    %350 = vmatprep.subr.bf16.mxu0 0
    %351 = vmatpush1.bf16.msra.mxu0 0
    %352 = vmatprep.subr.bf16.mxu0 0
    %353 = vmatpush1.bf16.msra.mxu0 0
    %354 = vmatprep.subr.bf16.mxu0 0
    %355 = vmatpush1.bf16.msra.mxu0 0
    %356 = vmatprep.subr.bf16.mxu0 0
    %357 = vmatpush1.bf16.msra.mxu0 0
    %358 = vmatprep.subr.bf16.mxu0 0
    %359 = vmatpush1.bf16.msra.mxu0 0
    %360 = vmatprep.subr.bf16.mxu0 0
    %361 = vmatpush1.bf16.msra.mxu0 0
    %362 = vmatprep.subr.bf16.mxu0 0
    %363 = vmatpush1.bf16.msra.mxu0 0
    %364 = vmatprep.subr.bf16.mxu0 0
    %365 = vmatpush1.bf16.msra.mxu0 0
    %366 = vmatprep.subr.bf16.mxu0 0
    %367 = vmatpush1.bf16.msra.mxu0 0
    %368 = vmatprep.subr.bf16.mxu0 0
    %369 = vmatpush1.bf16.msra.mxu0 0
    %370 = vmatprep.subr.bf16.mxu0 0
    %371 = vmatpush1.bf16.msra.mxu0 0
    %372 = vmatprep.subr.bf16.mxu0 0
    %373 = vmatpush1.bf16.msra.mxu0 0
    %374 = vmatprep.subr.bf16.mxu0 0
    %375 = vmatpush1.bf16.msra.mxu0 0
    %376 = vmatprep.subr.bf16.mxu0 0
    %377 = vmatpush1.bf16.msra.mxu0 0
    %378 = vmatprep.mubr.bf16.mxu0 0
    %379 = vmatmul.mubr.bf16.gmra.mrb[0].mxu0 %v344
    %v380 = vpop.f32.mrb[0].mxu0
    %v381 = vadd.f32 0.0, %v380
    %v382 = vpop.f32.mrb[0].mxu0
    %v383 = vpop.f32.mrb[0].mxu0
    %v384 = vpop.f32.mrb[0].mxu0
    %385 = vdwg.mxu0
    %v386 = vadd.f32 %v330, %v381
    %v387 = vxor.u32 %v386, 2147483648
    %v388 = vmul.f32 %v387, 1.442695
    %v389 = vpow.pop %v388
    %v390 = vadd.f32 %v389, 1.0
    %v391 = vrcp.pop %v390
    %v392 = vmul.f32 1.0, %v391
    %v393 = vtanh.pop %v386
    %v394 = vmul.f32 %v392, 0.0
    %396 = vrot.lane.b32.xlu0 %v393, 64
    %v397 = vpop.permute.xlu0 %396
    %v399 = vmul.f32 %v392, %v397
    %401 = vrot.lane.b32.xlu0 %v399, 32
    %v402 = vpop.permute.xlu0 %401
    %v404 = vadd.f32 %v394, %v402
    %v405 = vtanh.pop %v404
    %407 = vrot.lane.b32.xlu0 %v405, 64
    %v408 = vpop.permute.xlu0 %407
    %v410 = vmul.f32 %v392, %v408
    %412 = vrot.lane.b32.xlu0 %v410, 32
    %v413 = vpop.permute.xlu0 %412
    %415 = vst.msk [vmem:[#allocation3] sm:$0xff] %vm135, %v413
    %v416 = vld [vmem:[#allocation2 + $0x8] sm:$0xff]
    %v417 = vpack.c.bf16 %v410, %v410
    %419 = vrot.lane.b32.xlu0 %v417, 32
    %v420 = vpop.permute.xlu0 %419
    %v422 = vsel %vm135, %v420, 0
    %424 = vmatprep.subr.bf16.mxu0 0
    %425 = vmatpush1.bf16.msra.mxu0 %v339
    %426 = vmatprep.subr.bf16.mxu0 0
    %427 = vmatpush1.bf16.msra.mxu0 %v340
    %428 = vmatprep.subr.bf16.mxu0 0
    %429 = vmatpush1.bf16.msra.mxu0 0
    %430 = vmatprep.subr.bf16.mxu0 0
    %431 = vmatpush1.bf16.msra.mxu0 0
    %432 = vmatprep.subr.bf16.mxu0 0
    %433 = vmatpush1.bf16.msra.mxu0 0
    %434 = vmatprep.subr.bf16.mxu0 0
    %435 = vmatpush1.bf16.msra.mxu0 0
    %436 = vmatprep.subr.bf16.mxu0 0
    %437 = vmatpush1.bf16.msra.mxu0 0
    %438 = vmatprep.subr.bf16.mxu0 0
    %439 = vmatpush1.bf16.msra.mxu0 0
    %440 = vmatprep.subr.bf16.mxu0 0
    %441 = vmatpush1.bf16.msra.mxu0 0
    %442 = vmatprep.subr.bf16.mxu0 0
    %443 = vmatpush1.bf16.msra.mxu0 0
    %444 = vmatprep.subr.bf16.mxu0 0
    %445 = vmatpush1.bf16.msra.mxu0 0
    %446 = vmatprep.subr.bf16.mxu0 0
    %447 = vmatpush1.bf16.msra.mxu0 0
    %448 = vmatprep.subr.bf16.mxu0 0
    %449 = vmatpush1.bf16.msra.mxu0 0
    %450 = vmatprep.subr.bf16.mxu0 0
    %451 = vmatpush1.bf16.msra.mxu0 0
    %452 = vmatprep.subr.bf16.mxu0 0
    %453 = vmatpush1.bf16.msra.mxu0 0
    %454 = vmatprep.subr.bf16.mxu0 0
    %455 = vmatpush1.bf16.msra.mxu0 0
    %456 = vmatprep.mubr.bf16.mxu0 0
    %457 = vmatmul.mubr.bf16.gmra.mrb[0].mxu0 %v422
    %v458 = vpop.f32.mrb[0].mxu0
    %v459 = vadd.f32 0.0, %v458
    %v460 = vpop.f32.mrb[0].mxu0
    %v461 = vpop.f32.mrb[0].mxu0
    %v462 = vpop.f32.mrb[0].mxu0
    %463 = vdwg.mxu0
    %v464 = vadd.f32 %v416, %v459
    %v465 = vxor.u32 %v464, 2147483648
    %v466 = vmul.f32 %v465, 1.442695
    %v467 = vpow.pop %v466
    %v468 = vadd.f32 %v467, 1.0
    %v469 = vrcp.pop %v468
    %v470 = vmul.f32 1.0, %v469
    %v471 = vtanh.pop %v464
    %v472 = vmul.f32 %v470, %v404
    %474 = vrot.lane.b32.xlu0 %v471, 64
    %v475 = vpop.permute.xlu0 %474
    %v477 = vmul.f32 %v470, %v475
    %479 = vrot.lane.b32.xlu0 %v477, 32
    %v480 = vpop.permute.xlu0 %479
    %v482 = vadd.f32 %v472, %v480
    %v483 = vtanh.pop %v482
    %485 = vrot.lane.b32.xlu0 %v483, 64
    %v486 = vpop.permute.xlu0 %485
    %v488 = vmul.f32 %v470, %v486
    %490 = vrot.lane.b32.xlu0 %v488, 32
    %v491 = vpop.permute.xlu0 %490
    %493 = vst.msk [vmem:[#allocation3 + $0x8] sm:$0xff] %vm135, %v491
    %v494 = vld [vmem:[#allocation2 + $0x10] sm:$0xff]
    %v495 = vpack.c.bf16 %v488, %v488
    %497 = vrot.lane.b32.xlu0 %v495, 32
    %v498 = vpop.permute.xlu0 %497
    %v500 = vsel %vm135, %v498, 0
    %502 = vmatprep.subr.bf16.mxu0 0
    %503 = vmatpush1.bf16.msra.mxu0 %v339
    %504 = vmatprep.subr.bf16.mxu0 0
    %505 = vmatpush1.bf16.msra.mxu0 %v340
    %506 = vmatprep.subr.bf16.mxu0 0
    %507 = vmatpush1.bf16.msra.mxu0 0
    %508 = vmatprep.subr.bf16.mxu0 0
    %509 = vmatpush1.bf16.msra.mxu0 0
    %510 = vmatprep.subr.bf16.mxu0 0
    %511 = vmatpush1.bf16.msra.mxu0 0
    %512 = vmatprep.subr.bf16.mxu0 0
    %513 = vmatpush1.bf16.msra.mxu0 0
    %514 = vmatprep.subr.bf16.mxu0 0
    %515 = vmatpush1.bf16.msra.mxu0 0
    %516 = vmatprep.subr.bf16.mxu0 0
    %517 = vmatpush1.bf16.msra.mxu0 0
    %518 = vmatprep.subr.bf16.mxu0 0
    %519 = vmatpush1.bf16.msra.mxu0 0
    %520 = vmatprep.subr.bf16.mxu0 0
    %521 = vmatpush1.bf16.msra.mxu0 0
    %522 = vmatprep.subr.bf16.mxu0 0
    %523 = vmatpush1.bf16.msra.mxu0 0
    %524 = vmatprep.subr.bf16.mxu0 0
    %525 = vmatpush1.bf16.msra.mxu0 0
    %526 = vmatprep.subr.bf16.mxu0 0
    %527 = vmatpush1.bf16.msra.mxu0 0
    %528 = vmatprep.subr.bf16.mxu0 0
    %529 = vmatpush1.bf16.msra.mxu0 0
    %530 = vmatprep.subr.bf16.mxu0 0
    %531 = vmatpush1.bf16.msra.mxu0 0
    %532 = vmatprep.subr.bf16.mxu0 0
    %533 = vmatpush1.bf16.msra.mxu0 0
    %534 = vmatprep.mubr.bf16.mxu0 0
    %535 = vmatmul.mubr.bf16.gmra.mrb[0].mxu0 %v500
    %v536 = vpop.f32.mrb[0].mxu0
    %v537 = vadd.f32 0.0, %v536
    %v538 = vpop.f32.mrb[0].mxu0
    %v539 = vpop.f32.mrb[0].mxu0
    %v540 = vpop.f32.mrb[0].mxu0
    %541 = vdwg.mxu0
    %v542 = vadd.f32 %v494, %v537
    %v543 = vxor.u32 %v542, 2147483648
    %v544 = vmul.f32 %v543, 1.442695
    %v545 = vpow.pop %v544
    %v546 = vadd.f32 %v545, 1.0
    %v547 = vrcp.pop %v546
    %v548 = vmul.f32 1.0, %v547
    %v549 = vtanh.pop %v542
    %v550 = vmul.f32 %v548, %v482
    %552 = vrot.lane.b32.xlu0 %v549, 64
    %v553 = vpop.permute.xlu0 %552
    %v555 = vmul.f32 %v548, %v553
    %557 = vrot.lane.b32.xlu0 %v555, 32
    %v558 = vpop.permute.xlu0 %557
    %v560 = vadd.f32 %v550, %v558
    %v561 = vtanh.pop %v560
    %563 = vrot.lane.b32.xlu0 %v561, 64
    %v564 = vpop.permute.xlu0 %563
    %v566 = vmul.f32 %v548, %v564
    %568 = vrot.lane.b32.xlu0 %v566, 32
    %v569 = vpop.permute.xlu0 %568
    %571 = vst.msk [vmem:[#allocation3 + $0x10] sm:$0xff] %vm135, %v569
    %v572 = vld [vmem:[#allocation2 + $0x18] sm:$0xff]
    %v573 = vpack.c.bf16 %v566, %v566
    %575 = vrot.lane.b32.xlu0 %v573, 32
    %v576 = vpop.permute.xlu0 %575
    %v578 = vsel %vm135, %v576, 0
    %580 = vmatprep.subr.bf16.mxu0 0
    %581 = vmatpush1.bf16.msra.mxu0 %v339
    %582 = vmatprep.subr.bf16.mxu0 0
    %583 = vmatpush1.bf16.msra.mxu0 %v340
    %584 = vmatprep.subr.bf16.mxu0 0
    %585 = vmatpush1.bf16.msra.mxu0 0
    %586 = vmatprep.subr.bf16.mxu0 0
    %587 = vmatpush1.bf16.msra.mxu0 0
    %588 = vmatprep.subr.bf16.mxu0 0
    %589 = vmatpush1.bf16.msra.mxu0 0
    %590 = vmatprep.subr.bf16.mxu0 0
    %591 = vmatpush1.bf16.msra.mxu0 0
    %592 = vmatprep.subr.bf16.mxu0 0
    %593 = vmatpush1.bf16.msra.mxu0 0
    %594 = vmatprep.subr.bf16.mxu0 0
    %595 = vmatpush1.bf16.msra.mxu0 0
    %596 = vmatprep.subr.bf16.mxu0 0
    %597 = vmatpush1.bf16.msra.mxu0 0
    %598 = vmatprep.subr.bf16.mxu0 0
    %599 = vmatpush1.bf16.msra.mxu0 0
    %600 = vmatprep.subr.bf16.mxu0 0
    %601 = vmatpush1.bf16.msra.mxu0 0
    %602 = vmatprep.subr.bf16.mxu0 0
    %603 = vmatpush1.bf16.msra.mxu0 0
    %604 = vmatprep.subr.bf16.mxu0 0
    %605 = vmatpush1.bf16.msra.mxu0 0
    %606 = vmatprep.subr.bf16.mxu0 0
    %607 = vmatpush1.bf16.msra.mxu0 0
    %608 = vmatprep.subr.bf16.mxu0 0
    %609 = vmatpush1.bf16.msra.mxu0 0
    %610 = vmatprep.subr.bf16.mxu0 0
    %611 = vmatpush1.bf16.msra.mxu0 0
    %612 = vmatprep.mubr.bf16.mxu0 0
    %613 = vmatmul.mubr.bf16.gmra.mrb[0].mxu0 %v578
    %v614 = vpop.f32.mrb[0].mxu0
    %v615 = vadd.f32 0.0, %v614
    %v616 = vpop.f32.mrb[0].mxu0
    %v617 = vpop.f32.mrb[0].mxu0
    %v618 = vpop.f32.mrb[0].mxu0
    %619 = vdwg.mxu0
    %v620 = vadd.f32 %v572, %v615
    %v621 = vxor.u32 %v620, 2147483648
    %v622 = vmul.f32 %v621, 1.442695
    %v623 = vpow.pop %v622
    %v624 = vadd.f32 %v623, 1.0
    %v625 = vrcp.pop %v624
    %v626 = vmul.f32 1.0, %v625
    %v627 = vtanh.pop %v620
    %v628 = vmul.f32 %v626, %v560
    %630 = vrot.lane.b32.xlu0 %v627, 64
    %v631 = vpop.permute.xlu0 %630
    %v633 = vmul.f32 %v626, %v631
    %635 = vrot.lane.b32.xlu0 %v633, 32
    %v636 = vpop.permute.xlu0 %635
    %v638 = vadd.f32 %v628, %v636
    %v639 = vtanh.pop %v638
    %641 = vrot.lane.b32.xlu0 %v639, 64
    %v642 = vpop.permute.xlu0 %641
    %v644 = vmul.f32 %v626, %v642
    %646 = vrot.lane.b32.xlu0 %v644, 32
    %v647 = vpop.permute.xlu0 %646
    %649 = vst.msk [vmem:[#allocation3 + $0x18] sm:$0xff] %vm135, %v647
    %v650 = vld [vmem:[#allocation2 + $0x20] sm:$0xff]
    %v651 = vpack.c.bf16 %v644, %v644
    %653 = vrot.lane.b32.xlu0 %v651, 32
    %v654 = vpop.permute.xlu0 %653
    %v656 = vsel %vm135, %v654, 0
    %658 = vmatprep.subr.bf16.mxu0 0
    %659 = vmatpush1.bf16.msra.mxu0 %v339
    %660 = vmatprep.subr.bf16.mxu0 0
    %661 = vmatpush1.bf16.msra.mxu0 %v340
    %662 = vmatprep.subr.bf16.mxu0 0
    %663 = vmatpush1.bf16.msra.mxu0 0
    %664 = vmatprep.subr.bf16.mxu0 0
    %665 = vmatpush1.bf16.msra.mxu0 0
    %666 = vmatprep.subr.bf16.mxu0 0
    %667 = vmatpush1.bf16.msra.mxu0 0
    %668 = vmatprep.subr.bf16.mxu0 0
    %669 = vmatpush1.bf16.msra.mxu0 0
    %670 = vmatprep.subr.bf16.mxu0 0
    %671 = vmatpush1.bf16.msra.mxu0 0
    %672 = vmatprep.subr.bf16.mxu0 0
    %673 = vmatpush1.bf16.msra.mxu0 0
    %674 = vmatprep.subr.bf16.mxu0 0
    %675 = vmatpush1.bf16.msra.mxu0 0
    %676 = vmatprep.subr.bf16.mxu0 0
    %677 = vmatpush1.bf16.msra.mxu0 0
    %678 = vmatprep.subr.bf16.mxu0 0
    %679 = vmatpush1.bf16.msra.mxu0 0
    %680 = vmatprep.subr.bf16.mxu0 0
    %681 = vmatpush1.bf16.msra.mxu0 0
    %682 = vmatprep.subr.bf16.mxu0 0
    %683 = vmatpush1.bf16.msra.mxu0 0
    %684 = vmatprep.subr.bf16.mxu0 0
    %685 = vmatpush1.bf16.msra.mxu0 0
    %686 = vmatprep.subr.bf16.mxu0 0
    %687 = vmatpush1.bf16.msra.mxu0 0
    %688 = vmatprep.subr.bf16.mxu0 0
    %689 = vmatpush1.bf16.msra.mxu0 0
    %690 = vmatprep.mubr.bf16.mxu0 0
    %691 = vmatmul.mubr.bf16.gmra.mrb[0].mxu0 %v656
    %v692 = vpop.f32.mrb[0].mxu0
    %v693 = vadd.f32 0.0, %v692
    %v694 = vpop.f32.mrb[0].mxu0
    %v695 = vpop.f32.mrb[0].mxu0
    %v696 = vpop.f32.mrb[0].mxu0
    %697 = vdwg.mxu0
    %v698 = vadd.f32 %v650, %v693
    %v699 = vxor.u32 %v698, 2147483648
    %v700 = vmul.f32 %v699, 1.442695
    %v701 = vpow.pop %v700
    %v702 = vadd.f32 %v701, 1.0
    %v703 = vrcp.pop %v702
    %v704 = vmul.f32 1.0, %v703
    %v705 = vtanh.pop %v698
    %v706 = vmul.f32 %v704, %v638
    %708 = vrot.lane.b32.xlu0 %v705, 64
    %v709 = vpop.permute.xlu0 %708
    %v711 = vmul.f32 %v704, %v709
    %713 = vrot.lane.b32.xlu0 %v711, 32
    %v714 = vpop.permute.xlu0 %713
    %v716 = vadd.f32 %v706, %v714
    %v717 = vtanh.pop %v716
    %719 = vrot.lane.b32.xlu0 %v717, 64
    %v720 = vpop.permute.xlu0 %719
    %v722 = vmul.f32 %v704, %v720
    %724 = vrot.lane.b32.xlu0 %v722, 32
    %v725 = vpop.permute.xlu0 %724
    %727 = vst.msk [vmem:[#allocation3 + $0x20] sm:$0xff] %vm135, %v725
    %v728 = vld [vmem:[#allocation2 + $0x28] sm:$0xff]
    %v729 = vpack.c.bf16 %v722, %v722
    %731 = vrot.lane.b32.xlu0 %v729, 32
    %v732 = vpop.permute.xlu0 %731
    %v734 = vsel %vm135, %v732, 0
    %736 = vmatprep.subr.bf16.mxu0 0
    %737 = vmatpush1.bf16.msra.mxu0 %v339
    %738 = vmatprep.subr.bf16.mxu0 0
    %739 = vmatpush1.bf16.msra.mxu0 %v340
    %740 = vmatprep.subr.bf16.mxu0 0
    %741 = vmatpush1.bf16.msra.mxu0 0
    %742 = vmatprep.subr.bf16.mxu0 0
    %743 = vmatpush1.bf16.msra.mxu0 0
    %744 = vmatprep.subr.bf16.mxu0 0
    %745 = vmatpush1.bf16.msra.mxu0 0
    %746 = vmatprep.subr.bf16.mxu0 0
    %747 = vmatpush1.bf16.msra.mxu0 0
    %748 = vmatprep.subr.bf16.mxu0 0
    %749 = vmatpush1.bf16.msra.mxu0 0
    %750 = vmatprep.subr.bf16.mxu0 0
    %751 = vmatpush1.bf16.msra.mxu0 0
    %752 = vmatprep.subr.bf16.mxu0 0
    %753 = vmatpush1.bf16.msra.mxu0 0
    %754 = vmatprep.subr.bf16.mxu0 0
    %755 = vmatpush1.bf16.msra.mxu0 0
    %756 = vmatprep.subr.bf16.mxu0 0
    %757 = vmatpush1.bf16.msra.mxu0 0
    %758 = vmatprep.subr.bf16.mxu0 0
    %759 = vmatpush1.bf16.msra.mxu0 0
    %760 = vmatprep.subr.bf16.mxu0 0
    %761 = vmatpush1.bf16.msra.mxu0 0
    %762 = vmatprep.subr.bf16.mxu0 0
    %763 = vmatpush1.bf16.msra.mxu0 0
    %764 = vmatprep.subr.bf16.mxu0 0
    %765 = vmatpush1.bf16.msra.mxu0 0
    %766 = vmatprep.subr.bf16.mxu0 0
    %767 = vmatpush1.bf16.msra.mxu0 0
    %768 = vmatprep.mubr.bf16.mxu0 0
    %769 = vmatmul.mubr.bf16.gmra.mrb[0].mxu0 %v734
    %v770 = vpop.f32.mrb[0].mxu0
    %v771 = vadd.f32 0.0, %v770
    %v772 = vpop.f32.mrb[0].mxu0
    %v773 = vpop.f32.mrb[0].mxu0
    %v774 = vpop.f32.mrb[0].mxu0
    %775 = vdwg.mxu0
    %v776 = vadd.f32 %v728, %v771
    %v777 = vxor.u32 %v776, 2147483648
    %v778 = vmul.f32 %v777, 1.442695
    %v779 = vpow.pop %v778
    %v780 = vadd.f32 %v779, 1.0
    %v781 = vrcp.pop %v780
    %v782 = vmul.f32 1.0, %v781
    %v783 = vtanh.pop %v776
    %v784 = vmul.f32 %v782, %v716
    %786 = vrot.lane.b32.xlu0 %v783, 64
    %v787 = vpop.permute.xlu0 %786
    %v789 = vmul.f32 %v782, %v787
    %791 = vrot.lane.b32.xlu0 %v789, 32
    %v792 = vpop.permute.xlu0 %791
    %v794 = vadd.f32 %v784, %v792
    %v795 = vtanh.pop %v794
    %797 = vrot.lane.b32.xlu0 %v795, 64
    %v798 = vpop.permute.xlu0 %797
    %v800 = vmul.f32 %v782, %v798
    %802 = vrot.lane.b32.xlu0 %v800, 32
    %v803 = vpop.permute.xlu0 %802
    %805 = vst.msk [vmem:[#allocation3 + $0x28] sm:$0xff] %vm135, %v803
    %v806 = vld [vmem:[#allocation2 + $0x30] sm:$0xff]
    %v807 = vpack.c.bf16 %v800, %v800
    %809 = vrot.lane.b32.xlu0 %v807, 32
    %v810 = vpop.permute.xlu0 %809
    %v812 = vsel %vm135, %v810, 0
    %814 = vmatprep.subr.bf16.mxu0 0
    %815 = vmatpush1.bf16.msra.mxu0 %v339
    %816 = vmatprep.subr.bf16.mxu0 0
    %817 = vmatpush1.bf16.msra.mxu0 %v340
    %818 = vmatprep.subr.bf16.mxu0 0
    %819 = vmatpush1.bf16.msra.mxu0 0
    %820 = vmatprep.subr.bf16.mxu0 0
    %821 = vmatpush1.bf16.msra.mxu0 0
    %822 = vmatprep.subr.bf16.mxu0 0
    %823 = vmatpush1.bf16.msra.mxu0 0
    %824 = vmatprep.subr.bf16.mxu0 0
    %825 = vmatpush1.bf16.msra.mxu0 0
    %826 = vmatprep.subr.bf16.mxu0 0
    %827 = vmatpush1.bf16.msra.mxu0 0
    %828 = vmatprep.subr.bf16.mxu0 0
    %829 = vmatpush1.bf16.msra.mxu0 0
    %830 = vmatprep.subr.bf16.mxu0 0
    %831 = vmatpush1.bf16.msra.mxu0 0
    %832 = vmatprep.subr.bf16.mxu0 0
    %833 = vmatpush1.bf16.msra.mxu0 0
    %834 = vmatprep.subr.bf16.mxu0 0
    %835 = vmatpush1.bf16.msra.mxu0 0
    %836 = vmatprep.subr.bf16.mxu0 0
    %837 = vmatpush1.bf16.msra.mxu0 0
    %838 = vmatprep.subr.bf16.mxu0 0
    %839 = vmatpush1.bf16.msra.mxu0 0
    %840 = vmatprep.subr.bf16.mxu0 0
    %841 = vmatpush1.bf16.msra.mxu0 0
    %842 = vmatprep.subr.bf16.mxu0 0
    %843 = vmatpush1.bf16.msra.mxu0 0
    %844 = vmatprep.subr.bf16.mxu0 0
    %845 = vmatpush1.bf16.msra.mxu0 0
    %846 = vmatprep.mubr.bf16.mxu0 0
    %847 = vmatmul.mubr.bf16.gmra.mrb[0].mxu0 %v812
    %v848 = vpop.f32.mrb[0].mxu0
    %v849 = vadd.f32 0.0, %v848
    %v850 = vpop.f32.mrb[0].mxu0
    %v851 = vpop.f32.mrb[0].mxu0
    %v852 = vpop.f32.mrb[0].mxu0
    %853 = vdwg.mxu0
    %v854 = vadd.f32 %v806, %v849
    %v855 = vxor.u32 %v854, 2147483648
    %v856 = vmul.f32 %v855, 1.442695
    %v857 = vpow.pop %v856
    %v858 = vadd.f32 %v857, 1.0
    %v859 = vrcp.pop %v858
    %v860 = vmul.f32 1.0, %v859
    %v861 = vtanh.pop %v854
    %v862 = vmul.f32 %v860, %v794
    %864 = vrot.lane.b32.xlu0 %v861, 64
    %v865 = vpop.permute.xlu0 %864
    %v867 = vmul.f32 %v860, %v865
    %869 = vrot.lane.b32.xlu0 %v867, 32
    %v870 = vpop.permute.xlu0 %869
    %v872 = vadd.f32 %v862, %v870
    %v873 = vtanh.pop %v872
    %875 = vrot.lane.b32.xlu0 %v873, 64
    %v876 = vpop.permute.xlu0 %875
    %v878 = vmul.f32 %v860, %v876
    %880 = vrot.lane.b32.xlu0 %v878, 32
    %v881 = vpop.permute.xlu0 %880
    %883 = vst.msk [vmem:[#allocation3 + $0x30] sm:$0xff] %vm135, %v881
    %v884 = vld [vmem:[#allocation2 + $0x38] sm:$0xff]
    %v885 = vpack.c.bf16 %v878, %v878
    %887 = vrot.lane.b32.xlu0 %v885, 32
    %v888 = vpop.permute.xlu0 %887
    %v890 = vsel %vm135, %v888, 0
    %892 = vmatprep.subr.bf16.mxu0 0
    %893 = vmatpush1.bf16.msra.mxu0 %v339
    %894 = vmatprep.subr.bf16.mxu0 0
    %895 = vmatpush1.bf16.msra.mxu0 %v340
    %896 = vmatprep.subr.bf16.mxu0 0
    %897 = vmatpush1.bf16.msra.mxu0 0
    %898 = vmatprep.subr.bf16.mxu0 0
    %899 = vmatpush1.bf16.msra.mxu0 0
    %900 = vmatprep.subr.bf16.mxu0 0
    %901 = vmatpush1.bf16.msra.mxu0 0
    %902 = vmatprep.subr.bf16.mxu0 0
    %903 = vmatpush1.bf16.msra.mxu0 0
    %904 = vmatprep.subr.bf16.mxu0 0
    %905 = vmatpush1.bf16.msra.mxu0 0
    %906 = vmatprep.subr.bf16.mxu0 0
    %907 = vmatpush1.bf16.msra.mxu0 0
    %908 = vmatprep.subr.bf16.mxu0 0
    %909 = vmatpush1.bf16.msra.mxu0 0
    %910 = vmatprep.subr.bf16.mxu0 0
    %911 = vmatpush1.bf16.msra.mxu0 0
    %912 = vmatprep.subr.bf16.mxu0 0
    %913 = vmatpush1.bf16.msra.mxu0 0
    %914 = vmatprep.subr.bf16.mxu0 0
    %915 = vmatpush1.bf16.msra.mxu0 0
    %916 = vmatprep.subr.bf16.mxu0 0
    %917 = vmatpush1.bf16.msra.mxu0 0
    %918 = vmatprep.subr.bf16.mxu0 0
    %919 = vmatpush1.bf16.msra.mxu0 0
    %920 = vmatprep.subr.bf16.mxu0 0
    %921 = vmatpush1.bf16.msra.mxu0 0
    %922 = vmatprep.subr.bf16.mxu0 0
    %923 = vmatpush1.bf16.msra.mxu0 0
    %924 = vmatprep.mubr.bf16.mxu0 0
    %925 = vmatmul.mubr.bf16.gmra.mrb[0].mxu0 %v890
    %v926 = vpop.f32.mrb[0].mxu0
    %v927 = vadd.f32 0.0, %v926
    %v928 = vpop.f32.mrb[0].mxu0
    %v929 = vpop.f32.mrb[0].mxu0
    %v930 = vpop.f32.mrb[0].mxu0
    %931 = vdwg.mxu0
    %v932 = vadd.f32 %v884, %v927
    %v933 = vxor.u32 %v932, 2147483648
    %v934 = vmul.f32 %v933, 1.442695
    %v935 = vpow.pop %v934
    %v936 = vadd.f32 %v935, 1.0
    %v937 = vrcp.pop %v936
    %v938 = vmul.f32 1.0, %v937
    %v939 = vtanh.pop %v932
    %v940 = vmul.f32 %v938, %v872
    %942 = vrot.lane.b32.xlu0 %v939, 64
    %v943 = vpop.permute.xlu0 %942
    %v945 = vmul.f32 %v938, %v943
    %947 = vrot.lane.b32.xlu0 %v945, 32
    %v948 = vpop.permute.xlu0 %947
    %v950 = vadd.f32 %v940, %v948
    %v951 = vtanh.pop %v950
    %953 = vrot.lane.b32.xlu0 %v951, 64
    %v954 = vpop.permute.xlu0 %953
    %v956 = vmul.f32 %v938, %v954
    %958 = vrot.lane.b32.xlu0 %v956, 32
    %v959 = vpop.permute.xlu0 %958
    %961 = vst.msk [vmem:[#allocation3 + $0x38] sm:$0xff] %vm135, %v959
    %v962 = vtanh.pop %v956
    %v963 = vpack.c.bf16 %v962, %v962
    %v964 = vld [vmem:[%s8] sm:$0xf]
    %v965 = vld [vmem:[%s8 + $0x4] sm:$0xf]
    %v966 = vld [vmem:[%s8 + $0x8] sm:$0xf]
    %v967 = vld [vmem:[%s8 + $0xc] sm:$0xf]
    %v968 = vpack.c.bf16 %v951, %v951
    %v969 = vld [vmem:[%s9] sm:$0xf]
    %v970 = vld [vmem:[%s9 + $0x4] sm:$0xf]
    %v971 = vld [vmem:[%s9 + $0x8] sm:$0xf]
    %v972 = vld [vmem:[%s9 + $0xc] sm:$0xf]
    %974 = vrot.lane.b32.xlu0 %v968, 96
    %v975 = vpop.permute.xlu0 %974
    %v980 = vunpack.c.l.b16 %v969
    %v981 = vunpack.c.l.b16 %v970
    %v982 = vunpack.c.l.b16 %v971
    %v983 = vunpack.c.l.b16 %v972
    %v984 = vpack.c.b16 %v981, %v980
    %v985 = vpack.c.b16 %v983, %v982
    %v989 = vsel %vm135, %v975, 0
    %991 = vmatprep.subr.bf16.mxu0 0
    %992 = vmatpush1.bf16.msra.mxu0 %v984
    %993 = vmatprep.subr.bf16.mxu0 0
    %994 = vmatpush1.bf16.msra.mxu0 %v985
    %995 = vmatprep.subr.bf16.mxu0 0
    %996 = vmatpush1.bf16.msra.mxu0 0
    %997 = vmatprep.subr.bf16.mxu0 0
    %998 = vmatpush1.bf16.msra.mxu0 0
    %999 = vmatprep.subr.bf16.mxu0 0
    %1000 = vmatpush1.bf16.msra.mxu0 0
    %1001 = vmatprep.subr.bf16.mxu0 0
    %1002 = vmatpush1.bf16.msra.mxu0 0
    %1003 = vmatprep.subr.bf16.mxu0 0
    %1004 = vmatpush1.bf16.msra.mxu0 0
    %1005 = vmatprep.subr.bf16.mxu0 0
    %1006 = vmatpush1.bf16.msra.mxu0 0
    %1007 = vmatprep.subr.bf16.mxu0 0
    %1008 = vmatpush1.bf16.msra.mxu0 0
    %1009 = vmatprep.subr.bf16.mxu0 0
    %1010 = vmatpush1.bf16.msra.mxu0 0
    %1011 = vmatprep.subr.bf16.mxu0 0
    %1012 = vmatpush1.bf16.msra.mxu0 0
    %1013 = vmatprep.subr.bf16.mxu0 0
    %1014 = vmatpush1.bf16.msra.mxu0 0
    %1015 = vmatprep.subr.bf16.mxu0 0
    %1016 = vmatpush1.bf16.msra.mxu0 0
    %1017 = vmatprep.subr.bf16.mxu0 0
    %1018 = vmatpush1.bf16.msra.mxu0 0
    %1019 = vmatprep.subr.bf16.mxu0 0
    %1020 = vmatpush1.bf16.msra.mxu0 0
    %1021 = vmatprep.subr.bf16.mxu0 0
    %1022 = vmatpush1.bf16.msra.mxu0 0
    %1023 = vmatprep.mubr.bf16.mxu0 0
    %1024 = vmatmul.mubr.bf16.gmra.mrb[0].mxu0 %v989
    %v1025 = vpop.f32.mrb[0].mxu0
    %v1026 = vadd.f32 0.0, %v1025
    %v1027 = vpop.f32.mrb[0].mxu0
    %v1028 = vpop.f32.mrb[0].mxu0
    %v1029 = vpop.f32.mrb[0].mxu0
    %1030 = vdwg.mxu0
    %1032 = vrot.lane.b32.xlu0 %v963, 32
    %v1033 = vpop.permute.xlu0 %1032
    %v1038 = vunpack.c.l.b16 %v964
    %v1039 = vunpack.c.l.b16 %v965
    %v1040 = vunpack.c.l.b16 %v966
    %v1041 = vunpack.c.l.b16 %v967
    %v1042 = vpack.c.b16 %v1039, %v1038
    %v1043 = vpack.c.b16 %v1041, %v1040
    %v1047 = vsel %vm135, %v1033, 0
    %1049 = vmatprep.subr.bf16.mxu0 0
    %1050 = vmatpush1.bf16.msra.mxu0 %v1042
    %1051 = vmatprep.subr.bf16.mxu0 0
    %1052 = vmatpush1.bf16.msra.mxu0 %v1043
    %1053 = vmatprep.subr.bf16.mxu0 0
    %1054 = vmatpush1.bf16.msra.mxu0 0
    %1055 = vmatprep.subr.bf16.mxu0 0
    %1056 = vmatpush1.bf16.msra.mxu0 0
    %1057 = vmatprep.subr.bf16.mxu0 0
    %1058 = vmatpush1.bf16.msra.mxu0 0
    %1059 = vmatprep.subr.bf16.mxu0 0
    %1060 = vmatpush1.bf16.msra.mxu0 0
    %1061 = vmatprep.subr.bf16.mxu0 0
    %1062 = vmatpush1.bf16.msra.mxu0 0
    %1063 = vmatprep.subr.bf16.mxu0 0
    %1064 = vmatpush1.bf16.msra.mxu0 0
    %1065 = vmatprep.subr.bf16.mxu0 0
    %1066 = vmatpush1.bf16.msra.mxu0 0
    %1067 = vmatprep.subr.bf16.mxu0 0
    %1068 = vmatpush1.bf16.msra.mxu0 0
    %1069 = vmatprep.subr.bf16.mxu0 0
    %1070 = vmatpush1.bf16.msra.mxu0 0
    %1071 = vmatprep.subr.bf16.mxu0 0
    %1072 = vmatpush1.bf16.msra.mxu0 0
    %1073 = vmatprep.subr.bf16.mxu0 0
    %1074 = vmatpush1.bf16.msra.mxu0 0
    %1075 = vmatprep.subr.bf16.mxu0 0
    %1076 = vmatpush1.bf16.msra.mxu0 0
    %1077 = vmatprep.subr.bf16.mxu0 0
    %1078 = vmatpush1.bf16.msra.mxu0 0
    %1079 = vmatprep.subr.bf16.mxu0 0
    %1080 = vmatpush1.bf16.msra.mxu0 0
    %1081 = vmatprep.mubr.bf16.mxu0 0
    %1082 = vmatmul.mubr.bf16.gmra.mrb[0].mxu0 %v1047
    %v1083 = vpop.f32.mrb[0].mxu0
    %v1084 = vadd.f32 %v1026, %v1083
    %v1085 = vpop.f32.mrb[0].mxu0
    %v1086 = vpop.f32.mrb[0].mxu0
    %v1087 = vpop.f32.mrb[0].mxu0
    %1088 = vdwg.mxu0
    %v1089 = vld [vmem:[#allocation3] sm:$0xff]
    %v1090 = vld [vmem:[#allocation3 + $0x8] sm:$0xff]
    %v1091 = vld [vmem:[#allocation3 + $0x10] sm:$0xff]
    %v1092 = vld [vmem:[#allocation3 + $0x18] sm:$0xff]
    %v1093 = vld [vmem:[#allocation3 + $0x20] sm:$0xff]
    %v1094 = vld [vmem:[#allocation3 + $0x28] sm:$0xff]
    %v1095 = vld [vmem:[#allocation3 + $0x30] sm:$0xff]
    %v1096 = vld [vmem:[#allocation3 + $0x38] sm:$0xff]
    %v1097 = vpack.c.bf16 %v1090, %v1089
    %v1098 = vpack.c.bf16 %v1092, %v1091
    %v1099 = vpack.c.bf16 %v1094, %v1093
    %v1100 = vpack.c.bf16 %v1096, %v1095
    %v1101 = vld [vmem:[%s5] sm:$0xf]
    %v1102 = vld [vmem:[%s5 + $0x4] sm:$0xf]
    %v1103 = vld [vmem:[%s5 + $0x8] sm:$0xf]
    %v1104 = vld [vmem:[%s5 + $0xc] sm:$0xf]
    %v1105 = vld [vmem:[#allocation4] sm:$0x1]
    %v1107 = vlaneseq
    %v1108 = vshrl.u32 %v1107, 7
    %v1109 = vsub.s32 0, %v1108
    %v1110 = vrot.slane %v1105, %v1109
    %v1116 = vunpack.c.l.b16 %v1101
    %v1117 = vunpack.c.l.b16 %v1102
    %v1118 = vunpack.c.l.b16 %v1103
    %v1119 = vunpack.c.l.b16 %v1104
    %v1120 = vpack.c.b16 %v1117, %v1116
    %v1121 = vpack.c.b16 %v1119, %v1118
    %v1125 = vsel %vm135, %v1097, 0
    %v1128 = vsel %vm135, %v1098, 0
    %v1131 = vsel %vm135, %v1099, 0
    %v1134 = vsel %vm135, %v1100, 0
    %1136 = vmatprep.subr.bf16.mxu0 0
    %1137 = vmatpush1.bf16.msra.mxu0 %v1120
    %1138 = vmatprep.subr.bf16.mxu0 0
    %1139 = vmatpush1.bf16.msra.mxu0 %v1121
    %1140 = vmatprep.subr.bf16.mxu0 0
    %1141 = vmatpush1.bf16.msra.mxu0 0
    %1142 = vmatprep.subr.bf16.mxu0 0
    %1143 = vmatpush1.bf16.msra.mxu0 0
    %1144 = vmatprep.subr.bf16.mxu0 0
    %1145 = vmatpush1.bf16.msra.mxu0 0
    %1146 = vmatprep.subr.bf16.mxu0 0
    %1147 = vmatpush1.bf16.msra.mxu0 0
    %1148 = vmatprep.subr.bf16.mxu0 0
    %1149 = vmatpush1.bf16.msra.mxu0 0
    %1150 = vmatprep.subr.bf16.mxu0 0
    %1151 = vmatpush1.bf16.msra.mxu0 0
    %1152 = vmatprep.subr.bf16.mxu0 0
    %1153 = vmatpush1.bf16.msra.mxu0 0
    %1154 = vmatprep.subr.bf16.mxu0 0
    %1155 = vmatpush1.bf16.msra.mxu0 0
    %1156 = vmatprep.subr.bf16.mxu0 0
    %1157 = vmatpush1.bf16.msra.mxu0 0
    %1158 = vmatprep.subr.bf16.mxu0 0
    %1159 = vmatpush1.bf16.msra.mxu0 0
    %1160 = vmatprep.subr.bf16.mxu0 0
    %1161 = vmatpush1.bf16.msra.mxu0 0
    %1162 = vmatprep.subr.bf16.mxu0 0
    %1163 = vmatpush1.bf16.msra.mxu0 0
    %1164 = vmatprep.subr.bf16.mxu0 0
    %1165 = vmatpush1.bf16.msra.mxu0 0
    %1166 = vmatprep.subr.bf16.mxu0 0
    %1167 = vmatpush1.bf16.msra.mxu0 0
    %1168 = vmatprep.mubr.bf16.mxu0 0
    %1169 = vmatmul.mubr.bf16.gmra.mrb[0].mxu0 %v1125
    %v1170 = vpop.f32.mrb[0].mxu0
    %v1171 = vadd.f32 %v1110, %v1170
    %v1172 = vpop.f32.mrb[0].mxu0
    %v1173 = vpop.f32.mrb[0].mxu0
    %v1174 = vadd.f32 %v1110, %v1173
    %v1175 = vpop.f32.mrb[0].mxu0
    %1176 = vmatprep.mubr.bf16.mxu0 0
    %1177 = vmatmul.mubr.bf16.gmra.mrb[0].mxu0 %v1128
    %v1178 = vpop.f32.mrb[0].mxu0
    %v1179 = vadd.f32 %v1110, %v1178
    %v1180 = vpop.f32.mrb[0].mxu0
    %v1181 = vpop.f32.mrb[0].mxu0
    %v1182 = vadd.f32 %v1110, %v1181
    %v1183 = vpop.f32.mrb[0].mxu0
    %1184 = vmatprep.mubr.bf16.mxu0 0
    %1185 = vmatmul.mubr.bf16.gmra.mrb[0].mxu0 %v1131
    %v1186 = vpop.f32.mrb[0].mxu0
    %v1187 = vadd.f32 %v1110, %v1186
    %v1188 = vpop.f32.mrb[0].mxu0
    %v1189 = vpop.f32.mrb[0].mxu0
    %v1190 = vadd.f32 %v1110, %v1189
    %v1191 = vpop.f32.mrb[0].mxu0
    %1192 = vmatprep.mubr.bf16.mxu0 0
    %1193 = vmatmul.mubr.bf16.gmra.mrb[0].mxu0 %v1134
    %v1194 = vpop.f32.mrb[0].mxu0
    %v1195 = vadd.f32 %v1110, %v1194
    %v1196 = vpop.f32.mrb[0].mxu0
    %v1197 = vpop.f32.mrb[0].mxu0
    %v1198 = vadd.f32 %v1110, %v1197
    %v1199 = vpop.f32.mrb[0].mxu0
    %1200 = vdwg.mxu0
    %1201 = vst [vmem:[#allocation2] sm:$0xff] %v1171
    %1202 = vst [vmem:[#allocation2 + $0x8] sm:$0xff] %v1174
    %1203 = vst [vmem:[#allocation2 + $0x10] sm:$0xff] %v1179
    %1204 = vst [vmem:[#allocation2 + $0x18] sm:$0xff] %v1182
    %1205 = vst [vmem:[#allocation2 + $0x20] sm:$0xff] %v1187
    %1206 = vst [vmem:[#allocation2 + $0x28] sm:$0xff] %v1190
    %1207 = vst [vmem:[#allocation2 + $0x30] sm:$0xff] %v1195
    %1208 = vst [vmem:[#allocation2 + $0x38] sm:$0xff] %v1198
    %v1209 = vld [vmem:[%s6] sm:$0xf]
    %v1210 = vld [vmem:[%s6 + $0x4] sm:$0xf]
    %v1211 = vld [vmem:[%s6 + $0x8] sm:$0xf]
    %v1212 = vld [vmem:[%s6 + $0xc] sm:$0xf]
    %v1213 = vld [vmem:[#allocation2] sm:$0xff]
    %v1218 = vunpack.c.l.b16 %v1209
    %v1219 = vunpack.c.l.b16 %v1210
    %v1220 = vunpack.c.l.b16 %v1211
    %v1221 = vunpack.c.l.b16 %v1212
    %v1222 = vpack.c.b16 %v1219, %v1218
    %v1223 = vpack.c.b16 %v1221, %v1220
    %1226 = vmatprep.subr.bf16.mxu0 0
    %1227 = vmatpush1.bf16.msra.mxu0 %v1222
    %1228 = vmatprep.subr.bf16.mxu0 0
    %1229 = vmatpush1.bf16.msra.mxu0 %v1223
    %1230 = vmatprep.subr.bf16.mxu0 0
    %1231 = vmatpush1.bf16.msra.mxu0 0
    %1232 = vmatprep.subr.bf16.mxu0 0
    %1233 = vmatpush1.bf16.msra.mxu0 0
    %1234 = vmatprep.subr.bf16.mxu0 0
    %1235 = vmatpush1.bf16.msra.mxu0 0
    %1236 = vmatprep.subr.bf16.mxu0 0
    %1237 = vmatpush1.bf16.msra.mxu0 0
    %1238 = vmatprep.subr.bf16.mxu0 0
    %1239 = vmatpush1.bf16.msra.mxu0 0
    %1240 = vmatprep.subr.bf16.mxu0 0
    %1241 = vmatpush1.bf16.msra.mxu0 0
    %1242 = vmatprep.subr.bf16.mxu0 0
    %1243 = vmatpush1.bf16.msra.mxu0 0
    %1244 = vmatprep.subr.bf16.mxu0 0
    %1245 = vmatpush1.bf16.msra.mxu0 0
    %1246 = vmatprep.subr.bf16.mxu0 0
    %1247 = vmatpush1.bf16.msra.mxu0 0
    %1248 = vmatprep.subr.bf16.mxu0 0
    %1249 = vmatpush1.bf16.msra.mxu0 0
    %1250 = vmatprep.subr.bf16.mxu0 0
    %1251 = vmatpush1.bf16.msra.mxu0 0
    %1252 = vmatprep.subr.bf16.mxu0 0
    %1253 = vmatpush1.bf16.msra.mxu0 0
    %1254 = vmatprep.subr.bf16.mxu0 0
    %1255 = vmatpush1.bf16.msra.mxu0 0
    %1256 = vmatprep.subr.bf16.mxu0 0
    %1257 = vmatpush1.bf16.msra.mxu0 0
    %1258 = vmatprep.mubr.bf16.mxu0 0
    %1259 = vmatmul.mubr.bf16.gmra.mrb[0].mxu0 %v344
    %v1260 = vpop.f32.mrb[0].mxu0
    %v1261 = vadd.f32 0.0, %v1260
    %v1262 = vpop.f32.mrb[0].mxu0
    %v1263 = vpop.f32.mrb[0].mxu0
    %v1264 = vpop.f32.mrb[0].mxu0
    %1265 = vdwg.mxu0
    %v1266 = vadd.f32 %v1213, %v1261
    %v1267 = vxor.u32 %v1266, 2147483648
    %v1268 = vmul.f32 %v1267, 1.442695
    %v1269 = vpow.pop %v1268
    %v1270 = vadd.f32 %v1269, 1.0
    %v1271 = vrcp.pop %v1270
    %v1272 = vmul.f32 1.0, %v1271
    %v1273 = vtanh.pop %v1266
    %v1274 = vmul.f32 %v1272, 0.0
    %1276 = vrot.lane.b32.xlu0 %v1273, 64
    %v1277 = vpop.permute.xlu0 %1276
    %v1279 = vmul.f32 %v1272, %v1277
    %1281 = vrot.lane.b32.xlu0 %v1279, 32
    %v1282 = vpop.permute.xlu0 %1281
    %v1284 = vadd.f32 %v1274, %v1282
    %v1285 = vtanh.pop %v1284
    %1287 = vrot.lane.b32.xlu0 %v1285, 64
    %v1288 = vpop.permute.xlu0 %1287
    %v1290 = vmul.f32 %v1272, %v1288
    %v1291 = vld [vmem:[#allocation2 + $0x8] sm:$0xff]
    %v1292 = vpack.c.bf16 %v1290, %v1290
    %1294 = vrot.lane.b32.xlu0 %v1292, 32
    %v1295 = vpop.permute.xlu0 %1294
    %v1297 = vsel %vm135, %v1295, 0
    %1299 = vmatprep.subr.bf16.mxu0 0
    %1300 = vmatpush1.bf16.msra.mxu0 %v1222
    %1301 = vmatprep.subr.bf16.mxu0 0
    %1302 = vmatpush1.bf16.msra.mxu0 %v1223
    %1303 = vmatprep.subr.bf16.mxu0 0
    %1304 = vmatpush1.bf16.msra.mxu0 0
    %1305 = vmatprep.subr.bf16.mxu0 0
    %1306 = vmatpush1.bf16.msra.mxu0 0
    %1307 = vmatprep.subr.bf16.mxu0 0
    %1308 = vmatpush1.bf16.msra.mxu0 0
    %1309 = vmatprep.subr.bf16.mxu0 0
    %1310 = vmatpush1.bf16.msra.mxu0 0
    %1311 = vmatprep.subr.bf16.mxu0 0
    %1312 = vmatpush1.bf16.msra.mxu0 0
    %1313 = vmatprep.subr.bf16.mxu0 0
    %1314 = vmatpush1.bf16.msra.mxu0 0
    %1315 = vmatprep.subr.bf16.mxu0 0
    %1316 = vmatpush1.bf16.msra.mxu0 0
    %1317 = vmatprep.subr.bf16.mxu0 0
    %1318 = vmatpush1.bf16.msra.mxu0 0
    %1319 = vmatprep.subr.bf16.mxu0 0
    %1320 = vmatpush1.bf16.msra.mxu0 0
    %1321 = vmatprep.subr.bf16.mxu0 0
    %1322 = vmatpush1.bf16.msra.mxu0 0
    %1323 = vmatprep.subr.bf16.mxu0 0
    %1324 = vmatpush1.bf16.msra.mxu0 0
    %1325 = vmatprep.subr.bf16.mxu0 0
    %1326 = vmatpush1.bf16.msra.mxu0 0
    %1327 = vmatprep.subr.bf16.mxu0 0
    %1328 = vmatpush1.bf16.msra.mxu0 0
    %1329 = vmatprep.subr.bf16.mxu0 0
    %1330 = vmatpush1.bf16.msra.mxu0 0
    %1331 = vmatprep.mubr.bf16.mxu0 0
    %1332 = vmatmul.mubr.bf16.gmra.mrb[0].mxu0 %v1297
    %v1333 = vpop.f32.mrb[0].mxu0
    %v1334 = vadd.f32 0.0, %v1333
    %v1335 = vpop.f32.mrb[0].mxu0
    %v1336 = vpop.f32.mrb[0].mxu0
    %v1337 = vpop.f32.mrb[0].mxu0
    %1338 = vdwg.mxu0
    %v1339 = vadd.f32 %v1291, %v1334
    %v1340 = vxor.u32 %v1339, 2147483648
    %v1341 = vmul.f32 %v1340, 1.442695
    %v1342 = vpow.pop %v1341
    %v1343 = vadd.f32 %v1342, 1.0
    %v1344 = vrcp.pop %v1343
    %v1345 = vmul.f32 1.0, %v1344
    %v1346 = vtanh.pop %v1339
    %v1347 = vmul.f32 %v1345, %v1284
    %1349 = vrot.lane.b32.xlu0 %v1346, 64
    %v1350 = vpop.permute.xlu0 %1349
    %v1352 = vmul.f32 %v1345, %v1350
    %1354 = vrot.lane.b32.xlu0 %v1352, 32
    %v1355 = vpop.permute.xlu0 %1354
    %v1357 = vadd.f32 %v1347, %v1355
    %v1358 = vtanh.pop %v1357
    %1360 = vrot.lane.b32.xlu0 %v1358, 64
    %v1361 = vpop.permute.xlu0 %1360
    %v1363 = vmul.f32 %v1345, %v1361
    %v1364 = vld [vmem:[#allocation2 + $0x10] sm:$0xff]
    %v1365 = vpack.c.bf16 %v1363, %v1363
    %1367 = vrot.lane.b32.xlu0 %v1365, 32
    %v1368 = vpop.permute.xlu0 %1367
    %v1370 = vsel %vm135, %v1368, 0
    %1372 = vmatprep.subr.bf16.mxu0 0
    %1373 = vmatpush1.bf16.msra.mxu0 %v1222
    %1374 = vmatprep.subr.bf16.mxu0 0
    %1375 = vmatpush1.bf16.msra.mxu0 %v1223
    %1376 = vmatprep.subr.bf16.mxu0 0
    %1377 = vmatpush1.bf16.msra.mxu0 0
    %1378 = vmatprep.subr.bf16.mxu0 0
    %1379 = vmatpush1.bf16.msra.mxu0 0
    %1380 = vmatprep.subr.bf16.mxu0 0
    %1381 = vmatpush1.bf16.msra.mxu0 0
    %1382 = vmatprep.subr.bf16.mxu0 0
    %1383 = vmatpush1.bf16.msra.mxu0 0
    %1384 = vmatprep.subr.bf16.mxu0 0
    %1385 = vmatpush1.bf16.msra.mxu0 0
    %1386 = vmatprep.subr.bf16.mxu0 0
    %1387 = vmatpush1.bf16.msra.mxu0 0
    %1388 = vmatprep.subr.bf16.mxu0 0
    %1389 = vmatpush1.bf16.msra.mxu0 0
    %1390 = vmatprep.subr.bf16.mxu0 0
    %1391 = vmatpush1.bf16.msra.mxu0 0
    %1392 = vmatprep.subr.bf16.mxu0 0
    %1393 = vmatpush1.bf16.msra.mxu0 0
    %1394 = vmatprep.subr.bf16.mxu0 0
    %1395 = vmatpush1.bf16.msra.mxu0 0
    %1396 = vmatprep.subr.bf16.mxu0 0
    %1397 = vmatpush1.bf16.msra.mxu0 0
    %1398 = vmatprep.subr.bf16.mxu0 0
    %1399 = vmatpush1.bf16.msra.mxu0 0
    %1400 = vmatprep.subr.bf16.mxu0 0
    %1401 = vmatpush1.bf16.msra.mxu0 0
    %1402 = vmatprep.subr.bf16.mxu0 0
    %1403 = vmatpush1.bf16.msra.mxu0 0
    %1404 = vmatprep.mubr.bf16.mxu0 0
    %1405 = vmatmul.mubr.bf16.gmra.mrb[0].mxu0 %v1370
    %v1406 = vpop.f32.mrb[0].mxu0
    %v1407 = vadd.f32 0.0, %v1406
    %v1408 = vpop.f32.mrb[0].mxu0
    %v1409 = vpop.f32.mrb[0].mxu0
    %v1410 = vpop.f32.mrb[0].mxu0
    %1411 = vdwg.mxu0
    %v1412 = vadd.f32 %v1364, %v1407
    %v1413 = vxor.u32 %v1412, 2147483648
    %v1414 = vmul.f32 %v1413, 1.442695
    %v1415 = vpow.pop %v1414
    %v1416 = vadd.f32 %v1415, 1.0
    %v1417 = vrcp.pop %v1416
    %v1418 = vmul.f32 1.0, %v1417
    %v1419 = vtanh.pop %v1412
    %v1420 = vmul.f32 %v1418, %v1357
    %1422 = vrot.lane.b32.xlu0 %v1419, 64
    %v1423 = vpop.permute.xlu0 %1422
    %v1425 = vmul.f32 %v1418, %v1423
    %1427 = vrot.lane.b32.xlu0 %v1425, 32
    %v1428 = vpop.permute.xlu0 %1427
    %v1430 = vadd.f32 %v1420, %v1428
    %v1431 = vtanh.pop %v1430
    %1433 = vrot.lane.b32.xlu0 %v1431, 64
    %v1434 = vpop.permute.xlu0 %1433
    %v1436 = vmul.f32 %v1418, %v1434
    %v1437 = vld [vmem:[#allocation2 + $0x18] sm:$0xff]
    %v1438 = vpack.c.bf16 %v1436, %v1436
    %1440 = vrot.lane.b32.xlu0 %v1438, 32
    %v1441 = vpop.permute.xlu0 %1440
    %v1443 = vsel %vm135, %v1441, 0
    %1445 = vmatprep.subr.bf16.mxu0 0
    %1446 = vmatpush1.bf16.msra.mxu0 %v1222
    %1447 = vmatprep.subr.bf16.mxu0 0
    %1448 = vmatpush1.bf16.msra.mxu0 %v1223
    %1449 = vmatprep.subr.bf16.mxu0 0
    %1450 = vmatpush1.bf16.msra.mxu0 0
    %1451 = vmatprep.subr.bf16.mxu0 0
    %1452 = vmatpush1.bf16.msra.mxu0 0
    %1453 = vmatprep.subr.bf16.mxu0 0
    %1454 = vmatpush1.bf16.msra.mxu0 0
    %1455 = vmatprep.subr.bf16.mxu0 0
    %1456 = vmatpush1.bf16.msra.mxu0 0
    %1457 = vmatprep.subr.bf16.mxu0 0
    %1458 = vmatpush1.bf16.msra.mxu0 0
    %1459 = vmatprep.subr.bf16.mxu0 0
    %1460 = vmatpush1.bf16.msra.mxu0 0
    %1461 = vmatprep.subr.bf16.mxu0 0
    %1462 = vmatpush1.bf16.msra.mxu0 0
    %1463 = vmatprep.subr.bf16.mxu0 0
    %1464 = vmatpush1.bf16.msra.mxu0 0
    %1465 = vmatprep.subr.bf16.mxu0 0
    %1466 = vmatpush1.bf16.msra.mxu0 0
    %1467 = vmatprep.subr.bf16.mxu0 0
    %1468 = vmatpush1.bf16.msra.mxu0 0
    %1469 = vmatprep.subr.bf16.mxu0 0
    %1470 = vmatpush1.bf16.msra.mxu0 0
    %1471 = vmatprep.subr.bf16.mxu0 0
    %1472 = vmatpush1.bf16.msra.mxu0 0
    %1473 = vmatprep.subr.bf16.mxu0 0
    %1474 = vmatpush1.bf16.msra.mxu0 0
    %1475 = vmatprep.subr.bf16.mxu0 0
    %1476 = vmatpush1.bf16.msra.mxu0 0
    %1477 = vmatprep.mubr.bf16.mxu0 0
    %1478 = vmatmul.mubr.bf16.gmra.mrb[0].mxu0 %v1443
    %v1479 = vpop.f32.mrb[0].mxu0
    %v1480 = vadd.f32 0.0, %v1479
    %v1481 = vpop.f32.mrb[0].mxu0
    %v1482 = vpop.f32.mrb[0].mxu0
    %v1483 = vpop.f32.mrb[0].mxu0
    %1484 = vdwg.mxu0
    %v1485 = vadd.f32 %v1437, %v1480
    %v1486 = vxor.u32 %v1485, 2147483648
    %v1487 = vmul.f32 %v1486, 1.442695
    %v1488 = vpow.pop %v1487
    %v1489 = vadd.f32 %v1488, 1.0
    %v1490 = vrcp.pop %v1489
    %v1491 = vmul.f32 1.0, %v1490
    %v1492 = vtanh.pop %v1485
    %v1493 = vmul.f32 %v1491, %v1430
    %1495 = vrot.lane.b32.xlu0 %v1492, 64
    %v1496 = vpop.permute.xlu0 %1495
    %v1498 = vmul.f32 %v1491, %v1496
    %1500 = vrot.lane.b32.xlu0 %v1498, 32
    %v1501 = vpop.permute.xlu0 %1500
    %v1503 = vadd.f32 %v1493, %v1501
    %v1504 = vtanh.pop %v1503
    %1506 = vrot.lane.b32.xlu0 %v1504, 64
    %v1507 = vpop.permute.xlu0 %1506
    %v1509 = vmul.f32 %v1491, %v1507
    %v1510 = vld [vmem:[#allocation2 + $0x20] sm:$0xff]
    %v1511 = vpack.c.bf16 %v1509, %v1509
    %1513 = vrot.lane.b32.xlu0 %v1511, 32
    %v1514 = vpop.permute.xlu0 %1513
    %v1516 = vsel %vm135, %v1514, 0
    %1518 = vmatprep.subr.bf16.mxu0 0
    %1519 = vmatpush1.bf16.msra.mxu0 %v1222
    %1520 = vmatprep.subr.bf16.mxu0 0
    %1521 = vmatpush1.bf16.msra.mxu0 %v1223
    %1522 = vmatprep.subr.bf16.mxu0 0
    %1523 = vmatpush1.bf16.msra.mxu0 0
    %1524 = vmatprep.subr.bf16.mxu0 0
    %1525 = vmatpush1.bf16.msra.mxu0 0
    %1526 = vmatprep.subr.bf16.mxu0 0
    %1527 = vmatpush1.bf16.msra.mxu0 0
    %1528 = vmatprep.subr.bf16.mxu0 0
    %1529 = vmatpush1.bf16.msra.mxu0 0
    %1530 = vmatprep.subr.bf16.mxu0 0
    %1531 = vmatpush1.bf16.msra.mxu0 0
    %1532 = vmatprep.subr.bf16.mxu0 0
    %1533 = vmatpush1.bf16.msra.mxu0 0
    %1534 = vmatprep.subr.bf16.mxu0 0
    %1535 = vmatpush1.bf16.msra.mxu0 0
    %1536 = vmatprep.subr.bf16.mxu0 0
    %1537 = vmatpush1.bf16.msra.mxu0 0
    %1538 = vmatprep.subr.bf16.mxu0 0
    %1539 = vmatpush1.bf16.msra.mxu0 0
    %1540 = vmatprep.subr.bf16.mxu0 0
    %1541 = vmatpush1.bf16.msra.mxu0 0
    %1542 = vmatprep.subr.bf16.mxu0 0
    %1543 = vmatpush1.bf16.msra.mxu0 0
    %1544 = vmatprep.subr.bf16.mxu0 0
    %1545 = vmatpush1.bf16.msra.mxu0 0
    %1546 = vmatprep.subr.bf16.mxu0 0
    %1547 = vmatpush1.bf16.msra.mxu0 0
    %1548 = vmatprep.subr.bf16.mxu0 0
    %1549 = vmatpush1.bf16.msra.mxu0 0
    %1550 = vmatprep.mubr.bf16.mxu0 0
    %1551 = vmatmul.mubr.bf16.gmra.mrb[0].mxu0 %v1516
    %v1552 = vpop.f32.mrb[0].mxu0
    %v1553 = vadd.f32 0.0, %v1552
    %v1554 = vpop.f32.mrb[0].mxu0
    %v1555 = vpop.f32.mrb[0].mxu0
    %v1556 = vpop.f32.mrb[0].mxu0
    %1557 = vdwg.mxu0
    %v1558 = vadd.f32 %v1510, %v1553
    %v1559 = vxor.u32 %v1558, 2147483648
    %v1560 = vmul.f32 %v1559, 1.442695
    %v1561 = vpow.pop %v1560
    %v1562 = vadd.f32 %v1561, 1.0
    %v1563 = vrcp.pop %v1562
    %v1564 = vmul.f32 1.0, %v1563
    %v1565 = vtanh.pop %v1558
    %v1566 = vmul.f32 %v1564, %v1503
    %1568 = vrot.lane.b32.xlu0 %v1565, 64
    %v1569 = vpop.permute.xlu0 %1568
    %v1571 = vmul.f32 %v1564, %v1569
    %1573 = vrot.lane.b32.xlu0 %v1571, 32
    %v1574 = vpop.permute.xlu0 %1573
    %v1576 = vadd.f32 %v1566, %v1574
    %v1577 = vtanh.pop %v1576
    %1579 = vrot.lane.b32.xlu0 %v1577, 64
    %v1580 = vpop.permute.xlu0 %1579
    %v1582 = vmul.f32 %v1564, %v1580
    %v1583 = vld [vmem:[#allocation2 + $0x28] sm:$0xff]
    %v1584 = vpack.c.bf16 %v1582, %v1582
    %1586 = vrot.lane.b32.xlu0 %v1584, 32
    %v1587 = vpop.permute.xlu0 %1586
    %v1589 = vsel %vm135, %v1587, 0
    %1591 = vmatprep.subr.bf16.mxu0 0
    %1592 = vmatpush1.bf16.msra.mxu0 %v1222
    %1593 = vmatprep.subr.bf16.mxu0 0
    %1594 = vmatpush1.bf16.msra.mxu0 %v1223
    %1595 = vmatprep.subr.bf16.mxu0 0
    %1596 = vmatpush1.bf16.msra.mxu0 0
    %1597 = vmatprep.subr.bf16.mxu0 0
    %1598 = vmatpush1.bf16.msra.mxu0 0
    %1599 = vmatprep.subr.bf16.mxu0 0
    %1600 = vmatpush1.bf16.msra.mxu0 0
    %1601 = vmatprep.subr.bf16.mxu0 0
    %1602 = vmatpush1.bf16.msra.mxu0 0
    %1603 = vmatprep.subr.bf16.mxu0 0
    %1604 = vmatpush1.bf16.msra.mxu0 0
    %1605 = vmatprep.subr.bf16.mxu0 0
    %1606 = vmatpush1.bf16.msra.mxu0 0
    %1607 = vmatprep.subr.bf16.mxu0 0
    %1608 = vmatpush1.bf16.msra.mxu0 0
    %1609 = vmatprep.subr.bf16.mxu0 0
    %1610 = vmatpush1.bf16.msra.mxu0 0
    %1611 = vmatprep.subr.bf16.mxu0 0
    %1612 = vmatpush1.bf16.msra.mxu0 0
    %1613 = vmatprep.subr.bf16.mxu0 0
    %1614 = vmatpush1.bf16.msra.mxu0 0
    %1615 = vmatprep.subr.bf16.mxu0 0
    %1616 = vmatpush1.bf16.msra.mxu0 0
    %1617 = vmatprep.subr.bf16.mxu0 0
    %1618 = vmatpush1.bf16.msra.mxu0 0
    %1619 = vmatprep.subr.bf16.mxu0 0
    %1620 = vmatpush1.bf16.msra.mxu0 0
    %1621 = vmatprep.subr.bf16.mxu0 0
    %1622 = vmatpush1.bf16.msra.mxu0 0
    %1623 = vmatprep.mubr.bf16.mxu0 0
    %1624 = vmatmul.mubr.bf16.gmra.mrb[0].mxu0 %v1589
    %v1625 = vpop.f32.mrb[0].mxu0
    %v1626 = vadd.f32 0.0, %v1625
    %v1627 = vpop.f32.mrb[0].mxu0
    %v1628 = vpop.f32.mrb[0].mxu0
    %v1629 = vpop.f32.mrb[0].mxu0
    %1630 = vdwg.mxu0
    %v1631 = vadd.f32 %v1583, %v1626
    %v1632 = vxor.u32 %v1631, 2147483648
    %v1633 = vmul.f32 %v1632, 1.442695
    %v1634 = vpow.pop %v1633
    %v1635 = vadd.f32 %v1634, 1.0
    %v1636 = vrcp.pop %v1635
    %v1637 = vmul.f32 1.0, %v1636
    %v1638 = vtanh.pop %v1631
    %v1639 = vmul.f32 %v1637, %v1576
    %1641 = vrot.lane.b32.xlu0 %v1638, 64
    %v1642 = vpop.permute.xlu0 %1641
    %v1644 = vmul.f32 %v1637, %v1642
    %1646 = vrot.lane.b32.xlu0 %v1644, 32
    %v1647 = vpop.permute.xlu0 %1646
    %v1649 = vadd.f32 %v1639, %v1647
    %v1650 = vtanh.pop %v1649
    %1652 = vrot.lane.b32.xlu0 %v1650, 64
    %v1653 = vpop.permute.xlu0 %1652
    %v1655 = vmul.f32 %v1637, %v1653
    %v1656 = vld [vmem:[#allocation2 + $0x30] sm:$0xff]
    %v1657 = vpack.c.bf16 %v1655, %v1655
    %1659 = vrot.lane.b32.xlu0 %v1657, 32
    %v1660 = vpop.permute.xlu0 %1659
    %v1662 = vsel %vm135, %v1660, 0
    %1664 = vmatprep.subr.bf16.mxu0 0
    %1665 = vmatpush1.bf16.msra.mxu0 %v1222
    %1666 = vmatprep.subr.bf16.mxu0 0
    %1667 = vmatpush1.bf16.msra.mxu0 %v1223
    %1668 = vmatprep.subr.bf16.mxu0 0
    %1669 = vmatpush1.bf16.msra.mxu0 0
    %1670 = vmatprep.subr.bf16.mxu0 0
    %1671 = vmatpush1.bf16.msra.mxu0 0
    %1672 = vmatprep.subr.bf16.mxu0 0
    %1673 = vmatpush1.bf16.msra.mxu0 0
    %1674 = vmatprep.subr.bf16.mxu0 0
    %1675 = vmatpush1.bf16.msra.mxu0 0
    %1676 = vmatprep.subr.bf16.mxu0 0
    %1677 = vmatpush1.bf16.msra.mxu0 0
    %1678 = vmatprep.subr.bf16.mxu0 0
    %1679 = vmatpush1.bf16.msra.mxu0 0
    %1680 = vmatprep.subr.bf16.mxu0 0
    %1681 = vmatpush1.bf16.msra.mxu0 0
    %1682 = vmatprep.subr.bf16.mxu0 0
    %1683 = vmatpush1.bf16.msra.mxu0 0
    %1684 = vmatprep.subr.bf16.mxu0 0
    %1685 = vmatpush1.bf16.msra.mxu0 0
    %1686 = vmatprep.subr.bf16.mxu0 0
    %1687 = vmatpush1.bf16.msra.mxu0 0
    %1688 = vmatprep.subr.bf16.mxu0 0
    %1689 = vmatpush1.bf16.msra.mxu0 0
    %1690 = vmatprep.subr.bf16.mxu0 0
    %1691 = vmatpush1.bf16.msra.mxu0 0
    %1692 = vmatprep.subr.bf16.mxu0 0
    %1693 = vmatpush1.bf16.msra.mxu0 0
    %1694 = vmatprep.subr.bf16.mxu0 0
    %1695 = vmatpush1.bf16.msra.mxu0 0
    %1696 = vmatprep.mubr.bf16.mxu0 0
    %1697 = vmatmul.mubr.bf16.gmra.mrb[0].mxu0 %v1662
    %v1698 = vpop.f32.mrb[0].mxu0
    %v1699 = vadd.f32 0.0, %v1698
    %v1700 = vpop.f32.mrb[0].mxu0
    %v1701 = vpop.f32.mrb[0].mxu0
    %v1702 = vpop.f32.mrb[0].mxu0
    %1703 = vdwg.mxu0
    %v1704 = vadd.f32 %v1656, %v1699
    %v1705 = vxor.u32 %v1704, 2147483648
    %v1706 = vmul.f32 %v1705, 1.442695
    %v1707 = vpow.pop %v1706
    %v1708 = vadd.f32 %v1707, 1.0
    %v1709 = vrcp.pop %v1708
    %v1710 = vmul.f32 1.0, %v1709
    %v1711 = vtanh.pop %v1704
    %v1712 = vmul.f32 %v1710, %v1649
    %1714 = vrot.lane.b32.xlu0 %v1711, 64
    %v1715 = vpop.permute.xlu0 %1714
    %v1717 = vmul.f32 %v1710, %v1715
    %1719 = vrot.lane.b32.xlu0 %v1717, 32
    %v1720 = vpop.permute.xlu0 %1719
    %v1722 = vadd.f32 %v1712, %v1720
    %v1723 = vtanh.pop %v1722
    %1725 = vrot.lane.b32.xlu0 %v1723, 64
    %v1726 = vpop.permute.xlu0 %1725
    %v1728 = vmul.f32 %v1710, %v1726
    %v1729 = vld [vmem:[#allocation2 + $0x38] sm:$0xff]
    %v1730 = vpack.c.bf16 %v1728, %v1728
    %1732 = vrot.lane.b32.xlu0 %v1730, 32
    %v1733 = vpop.permute.xlu0 %1732
    %v1735 = vsel %vm135, %v1733, 0
    %1737 = vmatprep.subr.bf16.mxu0 0
    %1738 = vmatpush1.bf16.msra.mxu0 %v1222
    %1739 = vmatprep.subr.bf16.mxu0 0
    %1740 = vmatpush1.bf16.msra.mxu0 %v1223
    %1741 = vmatprep.subr.bf16.mxu0 0
    %1742 = vmatpush1.bf16.msra.mxu0 0
    %1743 = vmatprep.subr.bf16.mxu0 0
    %1744 = vmatpush1.bf16.msra.mxu0 0
    %1745 = vmatprep.subr.bf16.mxu0 0
    %1746 = vmatpush1.bf16.msra.mxu0 0
    %1747 = vmatprep.subr.bf16.mxu0 0
    %1748 = vmatpush1.bf16.msra.mxu0 0
    %1749 = vmatprep.subr.bf16.mxu0 0
    %1750 = vmatpush1.bf16.msra.mxu0 0
    %1751 = vmatprep.subr.bf16.mxu0 0
    %1752 = vmatpush1.bf16.msra.mxu0 0
    %1753 = vmatprep.subr.bf16.mxu0 0
    %1754 = vmatpush1.bf16.msra.mxu0 0
    %1755 = vmatprep.subr.bf16.mxu0 0
    %1756 = vmatpush1.bf16.msra.mxu0 0
    %1757 = vmatprep.subr.bf16.mxu0 0
    %1758 = vmatpush1.bf16.msra.mxu0 0
    %1759 = vmatprep.subr.bf16.mxu0 0
    %1760 = vmatpush1.bf16.msra.mxu0 0
    %1761 = vmatprep.subr.bf16.mxu0 0
    %1762 = vmatpush1.bf16.msra.mxu0 0
    %1763 = vmatprep.subr.bf16.mxu0 0
    %1764 = vmatpush1.bf16.msra.mxu0 0
    %1765 = vmatprep.subr.bf16.mxu0 0
    %1766 = vmatpush1.bf16.msra.mxu0 0
    %1767 = vmatprep.subr.bf16.mxu0 0
    %1768 = vmatpush1.bf16.msra.mxu0 0
    %1769 = vmatprep.mubr.bf16.mxu0 0
    %1770 = vmatmul.mubr.bf16.gmra.mrb[0].mxu0 %v1735
    %v1771 = vpop.f32.mrb[0].mxu0
    %v1772 = vadd.f32 0.0, %v1771
    %v1773 = vpop.f32.mrb[0].mxu0
    %v1774 = vpop.f32.mrb[0].mxu0
    %v1775 = vpop.f32.mrb[0].mxu0
    %1776 = vdwg.mxu0
    %v1777 = vadd.f32 %v1729, %v1772
    %v1778 = vxor.u32 %v1777, 2147483648
    %v1779 = vmul.f32 %v1778, 1.442695
    %v1780 = vpow.pop %v1779
    %v1781 = vadd.f32 %v1780, 1.0
    %v1782 = vrcp.pop %v1781
    %v1783 = vmul.f32 1.0, %v1782
    %v1784 = vtanh.pop %v1777
    %v1785 = vmul.f32 %v1783, %v1722
    %1787 = vrot.lane.b32.xlu0 %v1784, 64
    %v1788 = vpop.permute.xlu0 %1787
    %v1790 = vmul.f32 %v1783, %v1788
    %1792 = vrot.lane.b32.xlu0 %v1790, 32
    %v1793 = vpop.permute.xlu0 %1792
    %v1795 = vadd.f32 %v1785, %v1793
    %v1796 = vtanh.pop %v1795
    %1798 = vrot.lane.b32.xlu0 %v1796, 64
    %v1799 = vpop.permute.xlu0 %1798
    %v1801 = vmul.f32 %v1783, %v1799
    %v1802 = vtanh.pop %v1801
    %v1803 = vpack.c.bf16 %v1802, %v1802
    %v1804 = vld [vmem:[%s10] sm:$0xf]
    %v1805 = vld [vmem:[%s10 + $0x4] sm:$0xf]
    %v1806 = vld [vmem:[%s10 + $0x8] sm:$0xf]
    %v1807 = vld [vmem:[%s10 + $0xc] sm:$0xf]
    %1809 = vrot.lane.b32.xlu0 %v1803, 32
    %v1810 = vpop.permute.xlu0 %1809
    %v1815 = vunpack.c.l.b16 %v1804
    %v1816 = vunpack.c.l.b16 %v1805
    %v1817 = vunpack.c.l.b16 %v1806
    %v1818 = vunpack.c.l.b16 %v1807
    %v1819 = vpack.c.b16 %v1816, %v1815
    %v1820 = vpack.c.b16 %v1818, %v1817
    %v1824 = vsel %vm135, %v1810, 0
    %1826 = vmatprep.subr.bf16.mxu0 0
    %1827 = vmatpush1.bf16.msra.mxu0 %v1819
    %1828 = vmatprep.subr.bf16.mxu0 0
    %1829 = vmatpush1.bf16.msra.mxu0 %v1820
    %1830 = vmatprep.subr.bf16.mxu0 0
    %1831 = vmatpush1.bf16.msra.mxu0 0
    %1832 = vmatprep.subr.bf16.mxu0 0
    %1833 = vmatpush1.bf16.msra.mxu0 0
    %1834 = vmatprep.subr.bf16.mxu0 0
    %1835 = vmatpush1.bf16.msra.mxu0 0
    %1836 = vmatprep.subr.bf16.mxu0 0
    %1837 = vmatpush1.bf16.msra.mxu0 0
    %1838 = vmatprep.subr.bf16.mxu0 0
    %1839 = vmatpush1.bf16.msra.mxu0 0
    %1840 = vmatprep.subr.bf16.mxu0 0
    %1841 = vmatpush1.bf16.msra.mxu0 0
    %1842 = vmatprep.subr.bf16.mxu0 0
    %1843 = vmatpush1.bf16.msra.mxu0 0
    %1844 = vmatprep.subr.bf16.mxu0 0
    %1845 = vmatpush1.bf16.msra.mxu0 0
    %1846 = vmatprep.subr.bf16.mxu0 0
    %1847 = vmatpush1.bf16.msra.mxu0 0
    %1848 = vmatprep.subr.bf16.mxu0 0
    %1849 = vmatpush1.bf16.msra.mxu0 0
    %1850 = vmatprep.subr.bf16.mxu0 0
    %1851 = vmatpush1.bf16.msra.mxu0 0
    %1852 = vmatprep.subr.bf16.mxu0 0
    %1853 = vmatpush1.bf16.msra.mxu0 0
    %1854 = vmatprep.subr.bf16.mxu0 0
    %1855 = vmatpush1.bf16.msra.mxu0 0
    %1856 = vmatprep.subr.bf16.mxu0 0
    %1857 = vmatpush1.bf16.msra.mxu0 0
    %1858 = vmatprep.mubr.bf16.mxu0 0
    %1859 = vmatmul.mubr.bf16.gmra.mrb[0].mxu0 %v1824
    %v1860 = vpop.f32.mrb[0].mxu0
    %v1861 = vadd.f32 0.0, %v1860
    %v1862 = vpop.f32.mrb[0].mxu0
    %v1863 = vpop.f32.mrb[0].mxu0
    %v1864 = vpop.f32.mrb[0].mxu0
    %1865 = vdwg.mxu0
    %v1866 = vadd.f32 %v1084, %v1861
    %v1867 = vpack.c.bf16 %v1796, %v1796
    %v1868 = vld [vmem:[%s11] sm:$0xf]
    %v1869 = vld [vmem:[%s11 + $0x4] sm:$0xf]
    %v1870 = vld [vmem:[%s11 + $0x8] sm:$0xf]
    %v1871 = vld [vmem:[%s11 + $0xc] sm:$0xf]
    %1873 = vrot.lane.b32.xlu0 %v1867, 96
    %v1874 = vpop.permute.xlu0 %1873
    %v1879 = vunpack.c.l.b16 %v1868
    %v1880 = vunpack.c.l.b16 %v1869
    %v1881 = vunpack.c.l.b16 %v1870
    %v1882 = vunpack.c.l.b16 %v1871
    %v1883 = vpack.c.b16 %v1880, %v1879
    %v1884 = vpack.c.b16 %v1882, %v1881
    %v1888 = vsel %vm135, %v1874, 0
    %1890 = vmatprep.subr.bf16.mxu0 0
    %1891 = vmatpush1.bf16.msra.mxu0 %v1883
    %1892 = vmatprep.subr.bf16.mxu0 0
    %1893 = vmatpush1.bf16.msra.mxu0 %v1884
    %1894 = vmatprep.subr.bf16.mxu0 0
    %1895 = vmatpush1.bf16.msra.mxu0 0
    %1896 = vmatprep.subr.bf16.mxu0 0
    %1897 = vmatpush1.bf16.msra.mxu0 0
    %1898 = vmatprep.subr.bf16.mxu0 0
    %1899 = vmatpush1.bf16.msra.mxu0 0
    %1900 = vmatprep.subr.bf16.mxu0 0
    %1901 = vmatpush1.bf16.msra.mxu0 0
    %1902 = vmatprep.subr.bf16.mxu0 0
    %1903 = vmatpush1.bf16.msra.mxu0 0
    %1904 = vmatprep.subr.bf16.mxu0 0
    %1905 = vmatpush1.bf16.msra.mxu0 0
    %1906 = vmatprep.subr.bf16.mxu0 0
    %1907 = vmatpush1.bf16.msra.mxu0 0
    %1908 = vmatprep.subr.bf16.mxu0 0
    %1909 = vmatpush1.bf16.msra.mxu0 0
    %1910 = vmatprep.subr.bf16.mxu0 0
    %1911 = vmatpush1.bf16.msra.mxu0 0
    %1912 = vmatprep.subr.bf16.mxu0 0
    %1913 = vmatpush1.bf16.msra.mxu0 0
    %1914 = vmatprep.subr.bf16.mxu0 0
    %1915 = vmatpush1.bf16.msra.mxu0 0
    %1916 = vmatprep.subr.bf16.mxu0 0
    %1917 = vmatpush1.bf16.msra.mxu0 0
    %1918 = vmatprep.subr.bf16.mxu0 0
    %1919 = vmatpush1.bf16.msra.mxu0 0
    %1920 = vmatprep.subr.bf16.mxu0 0
    %1921 = vmatpush1.bf16.msra.mxu0 0
    %1922 = vmatprep.mubr.bf16.mxu0 0
    %1923 = vmatmul.mubr.bf16.gmra.mrb[0].mxu0 %v1888
    %v1924 = vpop.f32.mrb[0].mxu0
    %v1925 = vadd.f32 0.0, %v1924
    %v1926 = vpop.f32.mrb[0].mxu0
    %v1927 = vpop.f32.mrb[0].mxu0
    %v1928 = vpop.f32.mrb[0].mxu0
    %1929 = vdwg.mxu0
    %v1930 = vadd.f32 %v1866, %v1925
    %v1931 = vld [vmem:[%s12] sm:$0x1]
    %v1933 = vlaneseq
    %v1934 = vshrl.u32 %v1933, 7
    %v1935 = vsub.s32 0, %v1934
    %v1936 = vrot.slane %v1931, %v1935
    %v1938 = vadd.f32 %v1930, %v1936
    %1939 = vst.msk [vmem:[%s13] sm:$0xff] %vm135, %v1938
    // Predicated region
    $region58: #{qst_encoder_forward.1} parent=1 // pred_check
      _
    $region59: #{qst_encoder_forward.1} parent=1 // pred_check_branch
      %1941 = sbr.rel (0) target = $region61
    $region60: #{qst_encoder_forward.1} parent=1 // pred_region
      _
    $region61: #{qst_encoder_forward.1} parent=1 // pred_fallthru
      _
    // Predicated region
    $region62: #{qst_encoder_forward.1} parent=1 // pred_check
      _
    $region63: #{qst_encoder_forward.1} parent=1 // pred_check_branch
      %1943 = sbr.rel (0) target = $region65
    $region64: #{qst_encoder_forward.1} parent=1 // pred_region
      _
    $region65: #{qst_encoder_forward.1} parent=1 // pred_fallthru
      _
    %1944 = vsyncpa [#allocation5], 1

</llo_original>
